<compile_context>
chip_gen: v6e
topology: v6e:2x2x1
jax: 0.10.0
libtpu: 0.0.40
codegen_flags: <defaults>
</compile_context>

<pallas_src>
import jax
import jax.numpy as jnp
from jax.experimental import pallas as pl
from jax.experimental.pallas import tpu as pltpu

LN_EPS = 1e-5  # torch.nn.LayerNorm default


def _round_up(v, m):
    return ((v + m - 1) // m) * m


def _vmem_cap_bytes():
    """Physical VMEM of the current chip (conservative fallback = 64 MiB, v7x)."""
    try:
        info = pltpu.get_tpu_info()
        return int(getattr(info, "vmem_capacity_bytes"))
    except Exception:
        return 64 << 20


# ---------------------------------------------------------------------------
# Kernel
# ---------------------------------------------------------------------------
def make_mlp_kernel(num_hidden, real_dims, out_pads):
    """Fused MLP kernel for `num_hidden` hidden layers.

    Ref order:
      x_ref (bf16 tile),
      Wt_0 ... Wt_{num_hidden}           (bf16, (in_pad, out_pad) each),
      vecs_ref                           (f32, rows = 3*num_hidden + 1:
                                          [b_i, gamma_i, beta_i]*L, b_last),
      out_ref (f32 tile)

    Feature dims are zero-padded to multiples of 128; `real_dims` carries the
    real LayerNorm widths used for the mean/variance divisors.
    """

    def kernel(*refs):
        x_ref = refs[0]
        out_ref = refs[-1]
        vecs_ref = refs[-2]
        w_refs = refs[1:1 + num_hidden + 1]

        h = x_ref[...]  # already bf16 (host-side cast)

        for li in range(num_hidden):
            op = out_pads[li]
            nr = real_dims[li]
            wt = w_refs[li][...]                                  # (in_pad, op) bf16
            b = vecs_ref[3 * li: 3 * li + 1, :op]                 # (1, op) f32
            gamma = vecs_ref[3 * li + 1: 3 * li + 2, :op]         # 0 on padded lanes
            beta = vecs_ref[3 * li + 2: 3 * li + 3, :op]          # 0 on padded lanes

            # Linear: bf16 MXU inputs, f32 accumulation.
            h32 = jnp.dot(h, wt, preferred_element_type=jnp.float32) + b

            # LayerNorm (pre-activation, matching MLP.forward's module order).
            # Padded lanes of h32 are exactly 0 (zero-padded W columns / b),
            # so the mean sum is unaffected; divide by the REAL width.
            inv_n = 1.0 / float(nr)
            mu = jnp.sum(h32, axis=-1, keepdims=True) * inv_n
            centered = h32 - mu
            if op != nr:
                lane = jax.lax.broadcasted_iota(jnp.int32, (1, op), 1)
                c_valid = jnp.where(lane < nr, centered, 0.0)
            else:
                c_valid = centered
            var = jnp.sum(c_valid * c_valid, axis=-1, keepdims=True) * inv_n
            # gamma/beta are 0 on padded lanes, so padded lanes return to 0.
            h32 = centered * jax.lax.rsqrt(var + LN_EPS) * gamma + beta

            # ReLU, then re-quantize for the next MXU matmul.
            # TODO(synk): on v6e/v7x this elementwise tail could run in bf16
            # (2 rows/vreg); kept f32 so it is also optimal on v5e.
            h = jnp.maximum(h32, 0.0).astype(jnp.bfloat16)

        # Final Linear (no norm, no activation).
        wt = w_refs[num_hidden][...]
        b = vecs_ref[3 * num_hidden: 3 * num_hidden + 1, :out_pads[num_hidden]]
        out_ref[...] = (
            jnp.dot(h, wt, preferred_element_type=jnp.float32) + b
        ).astype(out_ref.dtype)

    return kernel


# ---------------------------------------------------------------------------
# One-time parameter preparation (hoisted out of the per-call path)
# ---------------------------------------------------------------------------
def prepare_mlp_params(params):
    """Transpose W to (in, out), pad feature dims to 128, cast W->bf16, and
    pack all b/gamma/beta vectors into a single stacked f32 table."""
    num_hidden = len(params) - 1
    wts, meta = [], []
    for layer in params:
        w = jnp.asarray(layer["W"], jnp.float32)  # (out, in), torch layout
        out_d, in_d = w.shape
        in_p = _round_up(in_d, 128)
        out_p = _round_up(out_d, 128)
        wt = jnp.zeros((in_p, out_p), jnp.float32).at[:in_d, :out_d].set(w.T)
        wts.append(wt.astype(jnp.bfloat16))
        meta.append({"in_dim": in_d, "out_dim": out_d,
                     "in_pad": in_p, "out_pad": out_p})

    vec_w = max(m["out_pad"] for m in meta)
    rows = 3 * num_hidden + 1
    vecs = jnp.zeros((rows, vec_w), jnp.float32)
    for i in range(num_hidden):
        od = meta[i]["out_dim"]
        vecs = vecs.at[3 * i, :od].set(jnp.asarray(params[i]["b"], jnp.float32))
        vecs = vecs.at[3 * i + 1, :od].set(jnp.asarray(params[i]["gamma"], jnp.float32))
        vecs = vecs.at[3 * i + 2, :od].set(jnp.asarray(params[i]["beta"], jnp.float32))
    od = meta[-1]["out_dim"]
    vecs = vecs.at[3 * num_hidden, :od].set(jnp.asarray(params[-1]["b"], jnp.float32))

    return {"Wts": wts, "vecs": vecs, "meta": meta, "num_hidden": num_hidden}


# ---------------------------------------------------------------------------
# Wrapper
# ---------------------------------------------------------------------------
def mlp_pallas(x, prep):
    """x: (batch, input_dim) f32 (or bf16).  prep: output of prepare_mlp_params()."""
    batch, in_dim = x.shape
    wts, vecs, meta = prep["Wts"], prep["vecs"], prep["meta"]
    num_hidden = prep["num_hidden"]
    assert in_dim == meta[0]["in_dim"], "input_dim mismatch with prepared params"

    in_pad = meta[0]["in_pad"]
    out_dim = meta[-1]["out_dim"]
    out_pad = meta[-1]["out_pad"]
    max_pad = max(max(m["in_pad"], m["out_pad"]) for m in meta)

    def _bytes(a):
        return int(a.size) * a.dtype.itemsize

    # Weights + packed vectors are single-buffered (constant index map).
    weight_bytes = sum(_bytes(w) for w in wts) + _bytes(vecs)

    cap = _vmem_cap_bytes()
    frac = 0.75 if cap <= (64 << 20) else 0.85   # more headroom on v7x
    budget = int(cap * frac)

    def tile_bytes(tb):
        return (3 * tb * in_pad * 2        # bf16 x tiles (up to 3-deep pipeline)
                + 2 * tb * out_pad * 4     # f32 out tiles (double buffered)
                + 4 * tb * max_pad * 4)    # live f32 activation slabs

    # --- batch tile: multiple of 16 (bf16 sublane tile), as large as fits ----
    batch16 = _round_up(batch, 16)
    tb = _round_up(min(512, batch16), 16)
    while tb > 16 and weight_bytes + tile_bytes(tb) > budget:
        tb = max(16, _round_up(tb // 2, 16))
    # v7x megacore: ensure >= 2 parallel grid steps so both TCs get work.
    if cap <= (64 << 20) and _round_up(batch16, tb) // tb < 2 and tb > 16:
        tb = max(16, _round_up(tb // 2, 16))
    padded_batch = _round_up(batch16, tb)
    num_steps = padded_batch // tb

    vmem_needed = weight_bytes + tile_bytes(tb)
    vmem_limit = max(32 << 20, min(int(vmem_needed * 1.3) + (4 << 20), budget))

    # --- pad + bf16-cast x (skip the pad copy when nothing needs padding) ----
    if padded_batch == batch and in_pad == in_dim:
        xp = x.astype(jnp.bfloat16)
    else:
        xp = (jnp.zeros((padded_batch, in_pad), jnp.bfloat16)
              .at[:batch, :in_dim].set(x.astype(jnp.bfloat16)))

    kernel = make_mlp_kernel(
        num_hidden,
        real_dims=[m["out_dim"] for m in meta],
        out_pads=[m["out_pad"] for m in meta],
    )

    const_map = lambda i: (0, 0)              # resident across the batch grid
    x_map = lambda i: (i, 0)
    # Deeper x pipeline in the small-dim / DMA-latency-bound regime (v5e).
    x_buffers = 3 if (max_pad <= 512 and num_steps >= 3) else None

    def _specs(use_pm):
        def bs(shape, imap, buffers=None):
            if use_pm and buffers is not None and hasattr(pl, "Buffered"):
                try:
                    return pl.BlockSpec(shape, imap,
                                        pipeline_mode=pl.Buffered(buffers))
                except Exception:
                    pass
            return pl.BlockSpec(shape, imap)

        specs = [bs((tb, in_pad), x_map, x_buffers)]
        specs += [bs(w.shape, const_map, 1) for w in wts]      # single-buffered
        specs += [bs(vecs.shape, const_map, 1)]                # single-buffered
        return specs

    def _run(use_pm, limit):
        return pl.pallas_call(
            kernel,
            out_shape=jax.ShapeDtypeStruct((padded_batch, out_pad), jnp.float32),
            grid=(num_steps,),
            in_specs=_specs(use_pm),
            out_specs=pl.BlockSpec((tb, out_pad), x_map),
            compiler_params=pltpu.CompilerParams(
                dimension_semantics=("parallel",),
                vmem_limit_bytes=int(limit),
            ),
        )(xp, *wts, vecs)

    try:
        out = _run(True, vmem_limit)
    except Exception:
        # Fallback for jax versions without pipeline_mode / Buffered(1):
        # plain double-buffered specs (correct, just more resident VMEM).
        fb_limit = max(32 << 20,
                       min(int((2 * weight_bytes + tile_bytes(tb)) * 1.3)
                           + (4 << 20), budget))
        out = _run(False, fb_limit)

    if padded_batch == batch and out_pad == out_dim:
        return out
    return out[:batch, :out_dim]


# ---------------------------------------------------------------------------
# Deterministic parameter init (mirrors MLP.__init__ with init_type='kaiming')
# ---------------------------------------------------------------------------
def init_mlp_params(key, input_dim, output_dim, hidden_dims):
    if isinstance(hidden_dims, int):
        hidden_dims = [hidden_dims]
    dims = [input_dim] + list(hidden_dims) + [output_dim]
    params = []
    for i, (in_d, out_d) in enumerate(zip(dims[:-1], dims[1:])):
        key, kw, kb = jax.random.split(key, 3)
        # kaiming_normal_ (fan_in, leaky_relu a=0): std = sqrt(2 / fan_in)
        w = jax.random.normal(kw, (out_d, in_d), jnp.float32) * jnp.sqrt(2.0 / in_d)
        b = jax.random.normal(kb, (out_d,), jnp.float32) * 1e-6
        layer = {"W": w, "b": b}
        if i < len(dims) - 2:  # hidden layer -> has a LayerNorm
            layer["gamma"] = jnp.ones((out_d,), jnp.float32)
            layer["beta"] = jnp.zeros((out_d,), jnp.float32)
        params.append(layer)
    return params


# ---------------------------------------------------------------------------
# Pure-JAX references
# ---------------------------------------------------------------------------
def mlp_ref(x, params):
    """Full-f32 reference (matches the PyTorch module exactly)."""
    h = x
    for layer in params[:-1]:
        h = h @ layer["W"].T + layer["b"]
        mu = jnp.mean(h, axis=-1, keepdims=True)
        var = jnp.mean((h - mu) ** 2, axis=-1, keepdims=True)
        h = (h - mu) / jnp.sqrt(var + LN_EPS) * layer["gamma"] + layer["beta"]
        h = jnp.maximum(h, 0.0)
    return h @ params[-1]["W"].T + params[-1]["b"]


def mlp_ref_bf16(x, params):
    """Reference matching the kernel's quantization (bf16 dot inputs, f32 LN)."""
    h = x.astype(jnp.bfloat16)
    for layer in params[:-1]:
        wt = layer["W"].T.astype(jnp.bfloat16)
        h32 = jnp.dot(h, wt, preferred_element_type=jnp.float32) + layer["b"]
        mu = jnp.mean(h32, axis=-1, keepdims=True)
        var = jnp.mean((h32 - mu) ** 2, axis=-1, keepdims=True)
        h32 = (h32 - mu) * jax.lax.rsqrt(var + LN_EPS) * layer["gamma"] + layer["beta"]
        h = jnp.maximum(h32, 0.0).astype(jnp.bfloat16)
    wt = params[-1]["W"].T.astype(jnp.bfloat16)
    return jnp.dot(h, wt, preferred_element_type=jnp.float32) + params[-1]["b"]


if __name__ == "__main__":
    key = jax.random.PRNGKey(0)
    k_x, k_p = jax.random.split(key)

    batch, input_dim, hidden_dims, output_dim = 4, 16, [32, 32], 8
    x = jax.random.normal(k_x, (batch, input_dim), jnp.float32)
    params = init_mlp_params(k_p, input_dim, output_dim, hidden_dims)

    prep = prepare_mlp_params(params)        # one-time host-side prep
    out = mlp_pallas(x, prep)
    out = jax.block_until_ready(out)

    assert out.shape == (batch, output_dim)

    ref_q = mlp_ref_bf16(x, params)          # same quantization as the kernel
    ref_32 = mlp_ref(x, params)              # exact f32 module semantics
    assert jnp.allclose(out, ref_q, atol=2e-3, rtol=2e-3), "mismatch vs bf16-matched reference"
    assert jnp.allclose(out, ref_32, atol=5e-2, rtol=5e-2), "mismatch vs f32 reference"

    print("KERNEL_OK")
</pallas_src>

<mosaic_0001>
module attributes {stable_mosaic.version = 11 : i64} {
  func.func @kernel(%arg0: i32, %arg1: memref<16x128xbf16, #tpu.memory_space<vmem>>, %arg2: memref<128x128xbf16, #tpu.memory_space<vmem>>, %arg3: memref<128x128xbf16, #tpu.memory_space<vmem>>, %arg4: memref<128x128xbf16, #tpu.memory_space<vmem>>, %arg5: memref<7x128xf32, #tpu.memory_space<vmem>>, %arg6: memref<16x128xf32, #tpu.memory_space<vmem>>) attributes {dimension_semantics = [#tpu.dimension_semantics<parallel>], iteration_bounds = array<i64: 1>, scalar_prefetch = 0 : i64, scratch_operands = 0 : i64, tpu.core_type = #tpu.core_type<tc>, window_params = [{transform_indices = @transform_0, window_bounds = array<i64: 16, 128>}, {pipeline_mode = #tpu.pipeline_mode<synchronous>, transform_indices = @transform_1, window_bounds = array<i64: 128, 128>}, {pipeline_mode = #tpu.pipeline_mode<synchronous>, transform_indices = @transform_2, window_bounds = array<i64: 128, 128>}, {pipeline_mode = #tpu.pipeline_mode<synchronous>, transform_indices = @transform_3, window_bounds = array<i64: 128, 128>}, {pipeline_mode = #tpu.pipeline_mode<synchronous>, transform_indices = @transform_4, window_bounds = array<i64: 7, 128>}, {transform_indices = @transform_5, window_bounds = array<i64: 16, 128>}]} {
    %c0 = arith.constant 0 : index
    %c0_0 = arith.constant 0 : index
    %0 = vector.load %arg1[%c0, %c0_0] : memref<16x128xbf16, #tpu.memory_space<vmem>>, vector<16x128xbf16>
    %c0_1 = arith.constant 0 : index
    %c0_2 = arith.constant 0 : index
    %1 = vector.load %arg2[%c0_1, %c0_2] : memref<128x128xbf16, #tpu.memory_space<vmem>>, vector<128x128xbf16>
    %c0_3 = arith.constant 0 : index
    %c0_4 = arith.constant 0 : index
    %2 = vector.load %arg5[%c0_3, %c0_4] : memref<7x128xf32, #tpu.memory_space<vmem>>, vector<1x128xf32>
    %c1 = arith.constant 1 : index
    %c0_5 = arith.constant 0 : index
    %3 = vector.load %arg5[%c1, %c0_5] : memref<7x128xf32, #tpu.memory_space<vmem>>, vector<1x128xf32>
    %c2 = arith.constant 2 : index
    %c0_6 = arith.constant 0 : index
    %4 = vector.load %arg5[%c2, %c0_6] : memref<7x128xf32, #tpu.memory_space<vmem>>, vector<1x128xf32>
    %cst = arith.constant dense<0.000000e+00> : vector<16x128xf32>
    %5 = tpu.matmul %0, %1, %cst {dimension_numbers = #tpu.dot_dimension_numbers<[1], [0], [0], [1], [0, 0, 1, 1], [], []>} : vector<16x128xbf16>, vector<128x128xbf16>, vector<16x128xf32> -> vector<16x128xf32>
    %6 = vector.broadcast %2 : vector<1x128xf32> to vector<16x128xf32>
    %7 = arith.addf %5, %6 : vector<16x128xf32>
    %cst_7 = arith.constant dense<0.000000e+00> : vector<16xf32>
    %8 = vector.multi_reduction <add>, %7, %cst_7 [1] : vector<16x128xf32> to vector<16xf32>
    %9 = vector.shape_cast %8 : vector<16xf32> to vector<16x1xf32>
    %cst_8 = arith.constant 3.125000e-02 : f32
    %10 = vector.broadcast %cst_8 : f32 to vector<16x1xf32>
    %11 = arith.mulf %9, %10 : vector<16x1xf32>
    %12 = vector.broadcast %11 : vector<16x1xf32> to vector<16x128xf32>
    %13 = arith.subf %7, %12 : vector<16x128xf32>
    %14 = tpu.iota {dimensions = array<i32: 1>} : vector<1x128xi32>
    %c32_i32 = arith.constant 32 : i32
    %15 = vector.broadcast %c32_i32 : i32 to vector<1x128xi32>
    %16 = arith.cmpi slt, %14, %15 : vector<1x128xi32>
    %cst_9 = arith.constant 0.000000e+00 : f32
    %17 = vector.shape_cast %16 : vector<1x128xi1> to vector<1x128xi1>
    %18 = vector.broadcast %17 : vector<1x128xi1> to vector<16x128xi1>
    %19 = vector.broadcast %cst_9 : f32 to vector<16x128xf32>
    %20 = arith.select %18, %13, %19 : vector<16x128xi1>, vector<16x128xf32>
    %21 = arith.mulf %20, %20 : vector<16x128xf32>
    %cst_10 = arith.constant dense<0.000000e+00> : vector<16xf32>
    %22 = vector.multi_reduction <add>, %21, %cst_10 [1] : vector<16x128xf32> to vector<16xf32>
    %23 = vector.shape_cast %22 : vector<16xf32> to vector<16x1xf32>
    %cst_11 = arith.constant 3.125000e-02 : f32
    %24 = vector.broadcast %cst_11 : f32 to vector<16x1xf32>
    %25 = arith.mulf %23, %24 : vector<16x1xf32>
    %cst_12 = arith.constant 9.99999974E-6 : f32
    %26 = vector.broadcast %cst_12 : f32 to vector<16x1xf32>
    %27 = arith.addf %25, %26 : vector<16x1xf32>
    %28 = math.rsqrt %27 : vector<16x1xf32>
    %29 = vector.broadcast %28 : vector<16x1xf32> to vector<16x128xf32>
    %30 = arith.mulf %13, %29 : vector<16x128xf32>
    %31 = vector.broadcast %3 : vector<1x128xf32> to vector<16x128xf32>
    %32 = arith.mulf %30, %31 : vector<16x128xf32>
    %33 = vector.broadcast %4 : vector<1x128xf32> to vector<16x128xf32>
    %34 = arith.addf %32, %33 : vector<16x128xf32>
    %cst_13 = arith.constant 0.000000e+00 : f32
    %35 = vector.broadcast %cst_13 : f32 to vector<16x128xf32>
    %36 = arith.maximumf %34, %35 : vector<16x128xf32>
    %37 = arith.truncf %36 : vector<16x128xf32> to vector<16x128xbf16>
    %c0_14 = arith.constant 0 : index
    %c0_15 = arith.constant 0 : index
    %38 = vector.load %arg3[%c0_14, %c0_15] : memref<128x128xbf16, #tpu.memory_space<vmem>>, vector<128x128xbf16>
    %c3 = arith.constant 3 : index
    %c0_16 = arith.constant 0 : index
    %39 = vector.load %arg5[%c3, %c0_16] : memref<7x128xf32, #tpu.memory_space<vmem>>, vector<1x128xf32>
    %c4 = arith.constant 4 : index
    %c0_17 = arith.constant 0 : index
    %40 = vector.load %arg5[%c4, %c0_17] : memref<7x128xf32, #tpu.memory_space<vmem>>, vector<1x128xf32>
    %c5 = arith.constant 5 : index
    %c0_18 = arith.constant 0 : index
    %41 = vector.load %arg5[%c5, %c0_18] : memref<7x128xf32, #tpu.memory_space<vmem>>, vector<1x128xf32>
    %cst_19 = arith.constant dense<0.000000e+00> : vector<16x128xf32>
    %42 = tpu.matmul %37, %38, %cst_19 {dimension_numbers = #tpu.dot_dimension_numbers<[1], [0], [0], [1], [0, 0, 1, 1], [], []>} : vector<16x128xbf16>, vector<128x128xbf16>, vector<16x128xf32> -> vector<16x128xf32>
    %43 = vector.broadcast %39 : vector<1x128xf32> to vector<16x128xf32>
    %44 = arith.addf %42, %43 : vector<16x128xf32>
    %cst_20 = arith.constant dense<0.000000e+00> : vector<16xf32>
    %45 = vector.multi_reduction <add>, %44, %cst_20 [1] : vector<16x128xf32> to vector<16xf32>
    %46 = vector.shape_cast %45 : vector<16xf32> to vector<16x1xf32>
    %cst_21 = arith.constant 3.125000e-02 : f32
    %47 = vector.broadcast %cst_21 : f32 to vector<16x1xf32>
    %48 = arith.mulf %46, %47 : vector<16x1xf32>
    %49 = vector.broadcast %48 : vector<16x1xf32> to vector<16x128xf32>
    %50 = arith.subf %44, %49 : vector<16x128xf32>
    %51 = tpu.iota {dimensions = array<i32: 1>} : vector<1x128xi32>
    %c32_i32_22 = arith.constant 32 : i32
    %52 = vector.broadcast %c32_i32_22 : i32 to vector<1x128xi32>
    %53 = arith.cmpi slt, %51, %52 : vector<1x128xi32>
    %cst_23 = arith.constant 0.000000e+00 : f32
    %54 = vector.shape_cast %53 : vector<1x128xi1> to vector<1x128xi1>
    %55 = vector.broadcast %54 : vector<1x128xi1> to vector<16x128xi1>
    %56 = vector.broadcast %cst_23 : f32 to vector<16x128xf32>
    %57 = arith.select %55, %50, %56 : vector<16x128xi1>, vector<16x128xf32>
    %58 = arith.mulf %57, %57 : vector<16x128xf32>
    %cst_24 = arith.constant dense<0.000000e+00> : vector<16xf32>
    %59 = vector.multi_reduction <add>, %58, %cst_24 [1] : vector<16x128xf32> to vector<16xf32>
    %60 = vector.shape_cast %59 : vector<16xf32> to vector<16x1xf32>
    %cst_25 = arith.constant 3.125000e-02 : f32
    %61 = vector.broadcast %cst_25 : f32 to vector<16x1xf32>
    %62 = arith.mulf %60, %61 : vector<16x1xf32>
    %cst_26 = arith.constant 9.99999974E-6 : f32
    %63 = vector.broadcast %cst_26 : f32 to vector<16x1xf32>
    %64 = arith.addf %62, %63 : vector<16x1xf32>
    %65 = math.rsqrt %64 : vector<16x1xf32>
    %66 = vector.broadcast %65 : vector<16x1xf32> to vector<16x128xf32>
    %67 = arith.mulf %50, %66 : vector<16x128xf32>
    %68 = vector.broadcast %40 : vector<1x128xf32> to vector<16x128xf32>
    %69 = arith.mulf %67, %68 : vector<16x128xf32>
    %70 = vector.broadcast %41 : vector<1x128xf32> to vector<16x128xf32>
    %71 = arith.addf %69, %70 : vector<16x128xf32>
    %cst_27 = arith.constant 0.000000e+00 : f32
    %72 = vector.broadcast %cst_27 : f32 to vector<16x128xf32>
    %73 = arith.maximumf %71, %72 : vector<16x128xf32>
    %74 = arith.truncf %73 : vector<16x128xf32> to vector<16x128xbf16>
    %c0_28 = arith.constant 0 : index
    %c0_29 = arith.constant 0 : index
    %75 = vector.load %arg4[%c0_28, %c0_29] : memref<128x128xbf16, #tpu.memory_space<vmem>>, vector<128x128xbf16>
    %c6 = arith.constant 6 : index
    %c0_30 = arith.constant 0 : index
    %76 = vector.load %arg5[%c6, %c0_30] : memref<7x128xf32, #tpu.memory_space<vmem>>, vector<1x128xf32>
    %cst_31 = arith.constant dense<0.000000e+00> : vector<16x128xf32>
    %77 = tpu.matmul %74, %75, %cst_31 {dimension_numbers = #tpu.dot_dimension_numbers<[1], [0], [0], [1], [0, 0, 1, 1], [], []>} : vector<16x128xbf16>, vector<128x128xbf16>, vector<16x128xf32> -> vector<16x128xf32>
    %78 = vector.broadcast %76 : vector<1x128xf32> to vector<16x128xf32>
    %79 = arith.addf %77, %78 : vector<16x128xf32>
    %c0_32 = arith.constant 0 : index
    %c0_33 = arith.constant 0 : index
    %80 = vector.load %arg6[%c0_32, %c0_33] : memref<16x128xf32, #tpu.memory_space<vmem>>, vector<16x128xf32>
    tpu.vector_store %arg6[%c0_32, %c0_33], %79 {strides = array<i32>} : memref<16x128xf32, #tpu.memory_space<vmem>>, vector<16x128xf32>,
    return
  }
  func.func @transform_0(%arg0: i32) -> (i32, i32) {
    %c0_i32 = arith.constant 0 : i32
    %c0_i32_0 = arith.constant 0 : i32
    return %arg0, %c0_i32 : i32, i32
  }
  func.func @transform_1(%arg0: i32) -> (i32, i32) {
    %c0_i32 = arith.constant 0 : i32
    %c0_i32_0 = arith.constant 0 : i32
    %c0_i32_1 = arith.constant 0 : i32
    return %c0_i32, %c0_i32_0 : i32, i32
  }
  func.func @transform_2(%arg0: i32) -> (i32, i32) {
    %c0_i32 = arith.constant 0 : i32
    %c0_i32_0 = arith.constant 0 : i32
    %c0_i32_1 = arith.constant 0 : i32
    return %c0_i32, %c0_i32_0 : i32, i32
  }
  func.func @transform_3(%arg0: i32) -> (i32, i32) {
    %c0_i32 = arith.constant 0 : i32
    %c0_i32_0 = arith.constant 0 : i32
    %c0_i32_1 = arith.constant 0 : i32
    return %c0_i32, %c0_i32_0 : i32, i32
  }
  func.func @transform_4(%arg0: i32) -> (i32, i32) {
    %c0_i32 = arith.constant 0 : i32
    %c0_i32_0 = arith.constant 0 : i32
    %c0_i32_1 = arith.constant 0 : i32
    return %c0_i32, %c0_i32_0 : i32, i32
  }
  func.func @transform_5(%arg0: i32) -> (i32, i32) {
    %c0_i32 = arith.constant 0 : i32
    %c0_i32_0 = arith.constant 0 : i32
    return %arg0, %c0_i32 : i32, i32
  }
}

module attributes {stable_mosaic.version = 11 : i64} {
  func.func @kernel(%arg0: i32, %arg1: memref<16x128xbf16, #tpu.memory_space<vmem>>, %arg2: memref<128x128xbf16, #tpu.memory_space<vmem>>, %arg3: memref<128x128xbf16, #tpu.memory_space<vmem>>, %arg4: memref<128x128xbf16, #tpu.memory_space<vmem>>, %arg5: memref<7x128xf32, #tpu.memory_space<vmem>>, %arg6: memref<16x128xf32, #tpu.memory_space<vmem>>) attributes {dimension_semantics = [#tpu.dimension_semantics<parallel>], iteration_bounds = array<i64: 1>, scalar_prefetch = 0 : i64, scratch_operands = 0 : i64, tpu.core_type = #tpu.core_type<tc>, window_params = [{transform_indices = @transform_0, window_bounds = array<i64: 16, 128>}, {pipeline_mode = #tpu.pipeline_mode<synchronous>, transform_indices = @transform_1, window_bounds = array<i64: 128, 128>}, {pipeline_mode = #tpu.pipeline_mode<synchronous>, transform_indices = @transform_2, window_bounds = array<i64: 128, 128>}, {pipeline_mode = #tpu.pipeline_mode<synchronous>, transform_indices = @transform_3, window_bounds = array<i64: 128, 128>}, {pipeline_mode = #tpu.pipeline_mode<synchronous>, transform_indices = @transform_4, window_bounds = array<i64: 7, 128>}, {transform_indices = @transform_5, window_bounds = array<i64: 16, 128>}]} {
    %c0 = arith.constant 0 : index
    %c0_0 = arith.constant 0 : index
    %0 = vector.load %arg1[%c0, %c0_0] : memref<16x128xbf16, #tpu.memory_space<vmem>>, vector<16x128xbf16>
    %c0_1 = arith.constant 0 : index
    %c0_2 = arith.constant 0 : index
    %1 = vector.load %arg2[%c0_1, %c0_2] : memref<128x128xbf16, #tpu.memory_space<vmem>>, vector<128x128xbf16>
    %c0_3 = arith.constant 0 : index
    %c0_4 = arith.constant 0 : index
    %2 = vector.load %arg5[%c0_3, %c0_4] : memref<7x128xf32, #tpu.memory_space<vmem>>, vector<1x128xf32>
    %c1 = arith.constant 1 : index
    %c0_5 = arith.constant 0 : index
    %3 = vector.load %arg5[%c1, %c0_5] : memref<7x128xf32, #tpu.memory_space<vmem>>, vector<1x128xf32>
    %c2 = arith.constant 2 : index
    %c0_6 = arith.constant 0 : index
    %4 = vector.load %arg5[%c2, %c0_6] : memref<7x128xf32, #tpu.memory_space<vmem>>, vector<1x128xf32>
    %cst = arith.constant dense<0.000000e+00> : vector<16x128xf32>
    %5 = tpu.matmul %0, %1, %cst {dimension_numbers = #tpu.dot_dimension_numbers<[1], [0], [0], [1], [0, 0, 1, 1], [], []>} : vector<16x128xbf16>, vector<128x128xbf16>, vector<16x128xf32> -> vector<16x128xf32>
    %6 = vector.broadcast %2 : vector<1x128xf32> to vector<16x128xf32>
    %7 = arith.addf %5, %6 : vector<16x128xf32>
    %cst_7 = arith.constant dense<0.000000e+00> : vector<16xf32>
    %8 = vector.multi_reduction <add>, %7, %cst_7 [1] : vector<16x128xf32> to vector<16xf32>
    %9 = vector.shape_cast %8 : vector<16xf32> to vector<16x1xf32>
    %cst_8 = arith.constant 3.125000e-02 : f32
    %10 = vector.broadcast %cst_8 : f32 to vector<16x1xf32>
    %11 = arith.mulf %9, %10 : vector<16x1xf32>
    %12 = vector.broadcast %11 : vector<16x1xf32> to vector<16x128xf32>
    %13 = arith.subf %7, %12 : vector<16x128xf32>
    %14 = tpu.iota {dimensions = array<i32: 1>} : vector<1x128xi32>
    %c32_i32 = arith.constant 32 : i32
    %15 = vector.broadcast %c32_i32 : i32 to vector<1x128xi32>
    %16 = arith.cmpi slt, %14, %15 : vector<1x128xi32>
    %cst_9 = arith.constant 0.000000e+00 : f32
    %17 = vector.shape_cast %16 : vector<1x128xi1> to vector<1x128xi1>
    %18 = vector.broadcast %17 : vector<1x128xi1> to vector<16x128xi1>
    %19 = vector.broadcast %cst_9 : f32 to vector<16x128xf32>
    %20 = arith.select %18, %13, %19 : vector<16x128xi1>, vector<16x128xf32>
    %21 = arith.mulf %20, %20 : vector<16x128xf32>
    %cst_10 = arith.constant dense<0.000000e+00> : vector<16xf32>
    %22 = vector.multi_reduction <add>, %21, %cst_10 [1] : vector<16x128xf32> to vector<16xf32>
    %23 = vector.shape_cast %22 : vector<16xf32> to vector<16x1xf32>
    %cst_11 = arith.constant 3.125000e-02 : f32
    %24 = vector.broadcast %cst_11 : f32 to vector<16x1xf32>
    %25 = arith.mulf %23, %24 : vector<16x1xf32>
    %cst_12 = arith.constant 9.99999974E-6 : f32
    %26 = vector.broadcast %cst_12 : f32 to vector<16x1xf32>
    %27 = arith.addf %25, %26 : vector<16x1xf32>
    %28 = math.rsqrt %27 : vector<16x1xf32>
    %29 = vector.broadcast %28 : vector<16x1xf32> to vector<16x128xf32>
    %30 = arith.mulf %13, %29 : vector<16x128xf32>
    %31 = vector.broadcast %3 : vector<1x128xf32> to vector<16x128xf32>
    %32 = arith.mulf %30, %31 : vector<16x128xf32>
    %33 = vector.broadcast %4 : vector<1x128xf32> to vector<16x128xf32>
    %34 = arith.addf %32, %33 : vector<16x128xf32>
    %cst_13 = arith.constant 0.000000e+00 : f32
    %35 = vector.broadcast %cst_13 : f32 to vector<16x128xf32>
    %36 = arith.maximumf %34, %35 : vector<16x128xf32>
    %37 = arith.truncf %36 : vector<16x128xf32> to vector<16x128xbf16>
    %c0_14 = arith.constant 0 : index
    %c0_15 = arith.constant 0 : index
    %38 = vector.load %arg3[%c0_14, %c0_15] : memref<128x128xbf16, #tpu.memory_space<vmem>>, vector<128x128xbf16>
    %c3 = arith.constant 3 : index
    %c0_16 = arith.constant 0 : index
    %39 = vector.load %arg5[%c3, %c0_16] : memref<7x128xf32, #tpu.memory_space<vmem>>, vector<1x128xf32>
    %c4 = arith.constant 4 : index
    %c0_17 = arith.constant 0 : index
    %40 = vector.load %arg5[%c4, %c0_17] : memref<7x128xf32, #tpu.memory_space<vmem>>, vector<1x128xf32>
    %c5 = arith.constant 5 : index
    %c0_18 = arith.constant 0 : index
    %41 = vector.load %arg5[%c5, %c0_18] : memref<7x128xf32, #tpu.memory_space<vmem>>, vector<1x128xf32>
    %cst_19 = arith.constant dense<0.000000e+00> : vector<16x128xf32>
    %42 = tpu.matmul %37, %38, %cst_19 {dimension_numbers = #tpu.dot_dimension_numbers<[1], [0], [0], [1], [0, 0, 1, 1], [], []>} : vector<16x128xbf16>, vector<128x128xbf16>, vector<16x128xf32> -> vector<16x128xf32>
    %43 = vector.broadcast %39 : vector<1x128xf32> to vector<16x128xf32>
    %44 = arith.addf %42, %43 : vector<16x128xf32>
    %cst_20 = arith.constant dense<0.000000e+00> : vector<16xf32>
    %45 = vector.multi_reduction <add>, %44, %cst_20 [1] : vector<16x128xf32> to vector<16xf32>
    %46 = vector.shape_cast %45 : vector<16xf32> to vector<16x1xf32>
    %cst_21 = arith.constant 3.125000e-02 : f32
    %47 = vector.broadcast %cst_21 : f32 to vector<16x1xf32>
    %48 = arith.mulf %46, %47 : vector<16x1xf32>
    %49 = vector.broadcast %48 : vector<16x1xf32> to vector<16x128xf32>
    %50 = arith.subf %44, %49 : vector<16x128xf32>
    %51 = tpu.iota {dimensions = array<i32: 1>} : vector<1x128xi32>
    %c32_i32_22 = arith.constant 32 : i32
    %52 = vector.broadcast %c32_i32_22 : i32 to vector<1x128xi32>
    %53 = arith.cmpi slt, %51, %52 : vector<1x128xi32>
    %cst_23 = arith.constant 0.000000e+00 : f32
    %54 = vector.shape_cast %53 : vector<1x128xi1> to vector<1x128xi1>
    %55 = vector.broadcast %54 : vector<1x128xi1> to vector<16x128xi1>
    %56 = vector.broadcast %cst_23 : f32 to vector<16x128xf32>
    %57 = arith.select %55, %50, %56 : vector<16x128xi1>, vector<16x128xf32>
    %58 = arith.mulf %57, %57 : vector<16x128xf32>
    %cst_24 = arith.constant dense<0.000000e+00> : vector<16xf32>
    %59 = vector.multi_reduction <add>, %58, %cst_24 [1] : vector<16x128xf32> to vector<16xf32>
    %60 = vector.shape_cast %59 : vector<16xf32> to vector<16x1xf32>
    %cst_25 = arith.constant 3.125000e-02 : f32
    %61 = vector.broadcast %cst_25 : f32 to vector<16x1xf32>
    %62 = arith.mulf %60, %61 : vector<16x1xf32>
    %cst_26 = arith.constant 9.99999974E-6 : f32
    %63 = vector.broadcast %cst_26 : f32 to vector<16x1xf32>
    %64 = arith.addf %62, %63 : vector<16x1xf32>
    %65 = math.rsqrt %64 : vector<16x1xf32>
    %66 = vector.broadcast %65 : vector<16x1xf32> to vector<16x128xf32>
    %67 = arith.mulf %50, %66 : vector<16x128xf32>
    %68 = vector.broadcast %40 : vector<1x128xf32> to vector<16x128xf32>
    %69 = arith.mulf %67, %68 : vector<16x128xf32>
    %70 = vector.broadcast %41 : vector<1x128xf32> to vector<16x128xf32>
    %71 = arith.addf %69, %70 : vector<16x128xf32>
    %cst_27 = arith.constant 0.000000e+00 : f32
    %72 = vector.broadcast %cst_27 : f32 to vector<16x128xf32>
    %73 = arith.maximumf %71, %72 : vector<16x128xf32>
    %74 = arith.truncf %73 : vector<16x128xf32> to vector<16x128xbf16>
    %c0_28 = arith.constant 0 : index
    %c0_29 = arith.constant 0 : index
    %75 = vector.load %arg4[%c0_28, %c0_29] : memref<128x128xbf16, #tpu.memory_space<vmem>>, vector<128x128xbf16>
    %c6 = arith.constant 6 : index
    %c0_30 = arith.constant 0 : index
    %76 = vector.load %arg5[%c6, %c0_30] : memref<7x128xf32, #tpu.memory_space<vmem>>, vector<1x128xf32>
    %cst_31 = arith.constant dense<0.000000e+00> : vector<16x128xf32>
    %77 = tpu.matmul %74, %75, %cst_31 {dimension_numbers = #tpu.dot_dimension_numbers<[1], [0], [0], [1], [0, 0, 1, 1], [], []>} : vector<16x128xbf16>, vector<128x128xbf16>, vector<16x128xf32> -> vector<16x128xf32>
    %78 = vector.broadcast %76 : vector<1x128xf32> to vector<16x128xf32>
    %79 = arith.addf %77, %78 : vector<16x128xf32>
    %c0_32 = arith.constant 0 : index
    %c0_33 = arith.constant 0 : index
    %80 = vector.load %arg6[%c0_32, %c0_33] : memref<16x128xf32, #tpu.memory_space<vmem>>, vector<16x128xf32>
    tpu.vector_store %arg6[%c0_32, %c0_33], %79 {strides = array<i32>} : memref<16x128xf32, #tpu.memory_space<vmem>>, vector<16x128xf32>,
    return
  }
  func.func @transform_0(%arg0: i32) -> (i32, i32) {
    %c0_i32 = arith.constant 0 : i32
    %c0_i32_0 = arith.constant 0 : i32
    return %arg0, %c0_i32 : i32, i32
  }
  func.func @transform_1(%arg0: i32) -> (i32, i32) {
    %c0_i32 = arith.constant 0 : i32
    %c0_i32_0 = arith.constant 0 : i32
    %c0_i32_1 = arith.constant 0 : i32
    return %c0_i32, %c0_i32_0 : i32, i32
  }
  func.func @transform_2(%arg0: i32) -> (i32, i32) {
    %c0_i32 = arith.constant 0 : i32
    %c0_i32_0 = arith.constant 0 : i32
    %c0_i32_1 = arith.constant 0 : i32
    return %c0_i32, %c0_i32_0 : i32, i32
  }
  func.func @transform_3(%arg0: i32) -> (i32, i32) {
    %c0_i32 = arith.constant 0 : i32
    %c0_i32_0 = arith.constant 0 : i32
    %c0_i32_1 = arith.constant 0 : i32
    return %c0_i32, %c0_i32_0 : i32, i32
  }
  func.func @transform_4(%arg0: i32) -> (i32, i32) {
    %c0_i32 = arith.constant 0 : i32
    %c0_i32_0 = arith.constant 0 : i32
    %c0_i32_1 = arith.constant 0 : i32
    return %c0_i32, %c0_i32_0 : i32, i32
  }
  func.func @transform_5(%arg0: i32) -> (i32, i32) {
    %c0_i32 = arith.constant 0 : i32
    %c0_i32_0 = arith.constant 0 : i32
    return %arg0, %c0_i32 : i32, i32
  }
}

</mosaic_0001>

<llo_original>
// kernel: tpu_custom_call.1
$region0: #{tpu_custom_call.1}
  #allocation0 [shape = 'u32[]', space=smem, size = 0x4, offset = 0x4, fixed_abs, tag = 'smem constant byte address 0x4 - core index']
  #allocation1 [shape = 'u32[144,128]{1,0:T(1,128)}', space=vmem, size = 0x12000, scoped, tag = 'internal scratch']
  %s0 = inlined_call_operand.hbm [shape: bf16[16,128], index: 0, kind: input, shape index: {}]
  %s1 = inlined_call_operand.hbm [shape: bf16[128,128], index: 1, kind: input, shape index: {}]
  %s2 = inlined_call_operand.hbm [shape: bf16[128,128], index: 2, kind: input, shape index: {}]
  %s3 = inlined_call_operand.hbm [shape: bf16[128,128], index: 3, kind: input, shape index: {}]
  %s4 = inlined_call_operand.hbm [shape: f32[7,128], index: 4, kind: input, shape index: {}]
  %s5 = inlined_call_operand.hbm [shape: f32[16,128], index: 5, kind: output, shape index: {}]
  %s6 = sld [smem:[#allocation0]]
  $region50: #{tpu_custom_call.1} parent=0
    _
  %s8 = ssub.s32 1, %s6
  %s9 = scalar_select 0, %s8, %s6
  $region1: #{tpu_custom_call.1} parent=0
    #allocation2 [shape = 'u8[4096]{0}', space=vmem, size = 0x1000, scoped, tag = 'input window, operand 0, single buffered']
    #allocation3 [shape = 's32[1]{0}', space=sflag, size = 0x4, scoped, tag = 'scoped memory for tpu_custom_call.1']
    #allocation4 [shape = 's32[1]{0}', space=sflag, size = 0x4, scoped, tag = 'scoped memory for tpu_custom_call.1']
    #allocation5 [shape = 'u8[32768]{0}', space=vmem, size = 0x8000, scoped, tag = 'input window, operand 1, single buffered']
    #allocation6 [shape = 's32[1]{0}', space=sflag, size = 0x4, scoped, tag = 'scoped memory for tpu_custom_call.1']
    #allocation7 [shape = 'u8[32768]{0}', space=vmem, size = 0x8000, scoped, tag = 'input window, operand 2, single buffered']
    #allocation8 [shape = 'u8[32768]{0}', space=vmem, size = 0x8000, scoped, tag = 'input window, operand 3, single buffered']
    #allocation9 [shape = 's32[1]{0}', space=sflag, size = 0x4, scoped, tag = 'scoped memory for tpu_custom_call.1']
    #allocation10 [shape = 'u8[4096]{0}', space=vmem, size = 0x1000, scoped, tag = 'input window, operand 4, single buffered']
    #allocation11 [shape = 'u8[8192]{0}', space=vmem, size = 0x2000, scoped, tag = 'output window, operand 0, single buffered']
    %10 = vsyncpa [#allocation3], 0
    %11 = vsyncpa [#allocation6], 0
    %12 = vsyncpa [#allocation9], 0
    %13 = vsyncpa [#allocation4], 0
    // Predicated region
    $region2: #{tpu_custom_call.1} parent=1 // pred_check
      _
    $region3: #{tpu_custom_call.1} parent=1 // pred_check_branch
      %15 = sbr.rel (0) target = $region5
    $region4: #{tpu_custom_call.1} parent=1 // pred_region
      %s17 = ssub.s32 128, 128
      %18 = vsyncadd [#allocation3], %s17
      %s19 = sshll.u32 [#allocation2], 4
      %s20 = int_to_ptr.vmem [resolvable:$true] %s19
      %25 = dma.hbm_to_vmem [thread:$0]  %s0, 128, %s20, [#allocation3], 64, 64, 4
    $region5: #{tpu_custom_call.1} parent=1 // pred_fallthru
      _
    // Predicated region
    $region6: #{tpu_custom_call.1} parent=1 // pred_check
      _
    $region7: #{tpu_custom_call.1} parent=1 // pred_check_branch
      %27 = sbr.rel (0) target = $region9
    $region8: #{tpu_custom_call.1} parent=1 // pred_region
      %s29 = ssub.s32 1024, 1024
      %30 = vsyncadd [#allocation6], %s29
      %s31 = sshll.u32 [#allocation5], 4
      %s32 = int_to_ptr.vmem [resolvable:$true] %s31
      %37 = dma.hbm_to_vmem [thread:$0]  %s1, 1024, %s32, [#allocation6], 64, 64, 4
    $region9: #{tpu_custom_call.1} parent=1 // pred_fallthru
      _
    // Predicated region
    $region10: #{tpu_custom_call.1} parent=1 // pred_check
      _
    $region11: #{tpu_custom_call.1} parent=1 // pred_check_branch
      %39 = sbr.rel (0) target = $region13
    $region12: #{tpu_custom_call.1} parent=1 // pred_region
      %s41 = ssub.s32 1024, 1024
      %42 = vsyncadd [#allocation6], %s41
      %s43 = sshll.u32 [#allocation7], 4
      %s44 = int_to_ptr.vmem [resolvable:$true] %s43
      %49 = dma.hbm_to_vmem [thread:$0]  %s2, 1024, %s44, [#allocation6], 64, 64, 4
    $region13: #{tpu_custom_call.1} parent=1 // pred_fallthru
      _
    // Predicated region
    $region14: #{tpu_custom_call.1} parent=1 // pred_check
      _
    $region15: #{tpu_custom_call.1} parent=1 // pred_check_branch
      %51 = sbr.rel (0) target = $region17
    $region16: #{tpu_custom_call.1} parent=1 // pred_region
      %s53 = ssub.s32 1024, 1024
      %54 = vsyncadd [#allocation9], %s53
      %s55 = sshll.u32 [#allocation8], 4
      %s56 = int_to_ptr.vmem [resolvable:$true] %s55
      %61 = dma.hbm_to_vmem [thread:$0]  %s3, 1024, %s56, [#allocation9], 64, 64, 4
    $region17: #{tpu_custom_call.1} parent=1 // pred_fallthru
      _
    // Predicated region
    $region18: #{tpu_custom_call.1} parent=1 // pred_check
      _
    $region19: #{tpu_custom_call.1} parent=1 // pred_check_branch
      %63 = sbr.rel (0) target = $region21
    $region20: #{tpu_custom_call.1} parent=1 // pred_region
      %s65 = ssub.s32 128, 128
      %66 = vsyncadd [#allocation9], %s65
      %s68 = sshll.u32 [#allocation10], 4
      %s69 = int_to_ptr.vmem [resolvable:$true] %s68
      %71 = dma.hbm_to_vmem [thread:$0]  %s4, 128, %s69, [#allocation9]
    $region21: #{tpu_custom_call.1} parent=1 // pred_fallthru
      _
    // Predicated region
    $region22: #{tpu_custom_call.1} parent=1 // pred_check
      _
    $region23: #{tpu_custom_call.1} parent=1 // pred_check_branch
      %73 = sbr.rel (0) target = $region25
    $region24: #{tpu_custom_call.1} parent=1 // pred_region
      %74 = dma.done [#allocation3], 128
    $region25: #{tpu_custom_call.1} parent=1 // pred_fallthru
      _
    // Predicated region
    $region26: #{tpu_custom_call.1} parent=1 // pred_check
      _
    $region27: #{tpu_custom_call.1} parent=1 // pred_check_branch
      %76 = sbr.rel (0) target = $region29
    $region28: #{tpu_custom_call.1} parent=1 // pred_region
      %77 = dma.done [#allocation6], 1024
    $region29: #{tpu_custom_call.1} parent=1 // pred_fallthru
      _
    // Predicated region
    $region30: #{tpu_custom_call.1} parent=1 // pred_check
      _
    $region31: #{tpu_custom_call.1} parent=1 // pred_check_branch
      %79 = sbr.rel (0) target = $region33
    $region32: #{tpu_custom_call.1} parent=1 // pred_region
      %80 = dma.done [#allocation6], 1024
    $region33: #{tpu_custom_call.1} parent=1 // pred_fallthru
      _
    // Predicated region
    $region34: #{tpu_custom_call.1} parent=1 // pred_check
      _
    $region35: #{tpu_custom_call.1} parent=1 // pred_check_branch
      %82 = sbr.rel (0) target = $region37
    $region36: #{tpu_custom_call.1} parent=1 // pred_region
      %83 = dma.done [#allocation9], 1024
    $region37: #{tpu_custom_call.1} parent=1 // pred_fallthru
      _
    // Predicated region
    $region38: #{tpu_custom_call.1} parent=1 // pred_check
      _
    $region39: #{tpu_custom_call.1} parent=1 // pred_check_branch
      %85 = sbr.rel (0) target = $region41
    $region40: #{tpu_custom_call.1} parent=1 // pred_region
      %86 = dma.done [#allocation9], 128
    $region41: #{tpu_custom_call.1} parent=1 // pred_fallthru
      _
    %v88 = vld [vmem:[#allocation2] sm:$0xf]
    %v89 = vld [vmem:[#allocation2 + $0x4] sm:$0xf]
    %v90 = vld [vmem:[#allocation5] sm:$0xf]
    %v91 = vld [vmem:[#allocation5 + $0x4] sm:$0xf]
    %v92 = vld [vmem:[#allocation5 + $0x8] sm:$0xf]
    %v93 = vld [vmem:[#allocation5 + $0xc] sm:$0xf]
    %v94 = vld [vmem:[#allocation5 + $0x10] sm:$0xf]
    %v95 = vld [vmem:[#allocation5 + $0x14] sm:$0xf]
    %v96 = vld [vmem:[#allocation5 + $0x18] sm:$0xf]
    %v97 = vld [vmem:[#allocation5 + $0x1c] sm:$0xf]
    %v98 = vld [vmem:[#allocation5 + $0x20] sm:$0xf]
    %v99 = vld [vmem:[#allocation5 + $0x24] sm:$0xf]
    %v100 = vld [vmem:[#allocation5 + $0x28] sm:$0xf]
    %v101 = vld [vmem:[#allocation5 + $0x2c] sm:$0xf]
    %v102 = vld [vmem:[#allocation5 + $0x30] sm:$0xf]
    %v103 = vld [vmem:[#allocation5 + $0x34] sm:$0xf]
    %v104 = vld [vmem:[#allocation5 + $0x38] sm:$0xf]
    %v105 = vld [vmem:[#allocation5 + $0x3c] sm:$0xf]
    %v106 = vld [vmem:[#allocation10] sm:$0x1]
    %v107 = vld [vmem:[#allocation10 + $0x1] sm:$0x1]
    %v108 = vld [vmem:[#allocation10 + $0x2] sm:$0x1]
    %v109 = vlaneseq
    %v110 = vshrl.u32 %v109, 7
    %v111 = vsub.s32 0, %v110
    %v112 = vrot.slane %v106, %v111
    %v115 = vunpack.c.l.b16 %v88
    %v116 = vunpack.c.l.b16 %v89
    %v117 = vpack.c.b16 %v116, %v115
    %v135 = vunpack.c.l.b16 %v90
    %v136 = vunpack.c.l.b16 %v91
    %v137 = vunpack.c.l.b16 %v92
    %v138 = vunpack.c.l.b16 %v93
    %v139 = vunpack.c.l.b16 %v94
    %v140 = vunpack.c.l.b16 %v95
    %v141 = vunpack.c.l.b16 %v96
    %v142 = vunpack.c.l.b16 %v97
    %v143 = vunpack.c.l.b16 %v98
    %v144 = vunpack.c.l.b16 %v99
    %v145 = vunpack.c.l.b16 %v100
    %v146 = vunpack.c.l.b16 %v101
    %v147 = vunpack.c.l.b16 %v102
    %v148 = vunpack.c.l.b16 %v103
    %v149 = vunpack.c.l.b16 %v104
    %v150 = vunpack.c.l.b16 %v105
    %v151 = vpack.c.b16 %v136, %v135
    %v152 = vpack.c.b16 %v138, %v137
    %v153 = vpack.c.b16 %v140, %v139
    %v154 = vpack.c.b16 %v142, %v141
    %v155 = vpack.c.b16 %v144, %v143
    %v156 = vpack.c.b16 %v146, %v145
    %v157 = vpack.c.b16 %v148, %v147
    %v158 = vpack.c.b16 %v150, %v149
    %167 = vmatprep.subr.bf16.mxu0 0
    %168 = vmatpush1.bf16.msra.mxu0 %v158
    %169 = vmatprep.subr.bf16.mxu0 0
    %170 = vmatpush1.bf16.msra.mxu0 %v157
    %171 = vmatprep.subr.bf16.mxu0 0
    %172 = vmatpush1.bf16.msra.mxu0 %v156
    %173 = vmatprep.subr.bf16.mxu0 0
    %174 = vmatpush1.bf16.msra.mxu0 %v155
    %175 = vmatprep.subr.bf16.mxu0 0
    %176 = vmatpush1.bf16.msra.mxu0 %v154
    %177 = vmatprep.subr.bf16.mxu0 0
    %178 = vmatpush1.bf16.msra.mxu0 %v153
    %179 = vmatprep.subr.bf16.mxu0 0
    %180 = vmatpush1.bf16.msra.mxu0 %v152
    %181 = vmatprep.subr.bf16.mxu0 0
    %182 = vmatpush1.bf16.msra.mxu0 %v151
    %183 = vmatprep.subr.bf16.mxu0 0
    %184 = vmatpush2.bf16.msra.mxu0 0
    %185 = vmatprep.subr.bf16.mxu0 0
    %186 = vmatpush2.bf16.msra.mxu0 0
    %187 = vmatprep.subr.bf16.mxu0 0
    %188 = vmatpush2.bf16.msra.mxu0 0
    %189 = vmatprep.subr.bf16.mxu0 0
    %190 = vmatpush2.bf16.msra.mxu0 0
    %191 = vmatprep.subr.bf16.mxu0 0
    %192 = vmatpush2.bf16.msra.mxu0 0
    %193 = vmatprep.subr.bf16.mxu0 0
    %194 = vmatpush2.bf16.msra.mxu0 0
    %195 = vmatprep.subr.bf16.mxu0 0
    %196 = vmatpush2.bf16.msra.mxu0 0
    %197 = vmatprep.subr.bf16.mxu0 0
    %198 = vmatpush2.bf16.msra.mxu0 0
    %199 = vmatprep.mubr.bf16.mxu0 0
    %200 = vmatmul.mubr.bf16.gmra.mxu0 %v117
    %v201 = vpop.f32.mrf.mxu0
    %v202 = vadd.f32 %v112, %v201
    %v203 = vpop.f32.mrf.mxu0
    %v204 = vpop.f32.mrf.mxu0
    %v205 = vadd.f32 %v112, %v204
    %v206 = vpop.f32.mrf.mxu0
    %207 = vdwg.mxu0
    %208 = vadd.xlane.f32.xlu0 %v202
    %v209 = vpop.xlane.xlu0 %208
    %210 = vadd.xlane.f32.xlu0 %v205
    %v211 = vpop.xlane.xlu0 %210
    %v212 = vmul.f32 %v209, 0.03125
    %v213 = vmul.f32 %v211, 0.03125
    %v214 = vsub.f32 %v202, %v212
    %v215 = vsub.f32 %v205, %v213
    %v216 = vlaneseq
    %v217 = vand.u32 %v216, 127
    %vm218 = vcmp.lt.s32.totalorder %v217, 32
    %v219 = vsel %vm218, 1, 0
    %vm220 = vcmp.eq.s32.totalorder %v219, 1
    %v221 = vsel %vm220, %v214, 0.0
    %v222 = vsel %vm220, %v215, 0.0
    %v223 = vmul.f32 %v221, %v221
    %v224 = vmul.f32 %v222, %v222
    %225 = vadd.xlane.f32.xlu0 %v223
    %v226 = vpop.xlane.xlu0 %225
    %227 = vadd.xlane.f32.xlu0 %v224
    %v228 = vpop.xlane.xlu0 %227
    %v229 = vmul.f32 %v226, 0.03125
    %v230 = vmul.f32 %v228, 0.03125
    %v231 = vadd.f32 %v229, 1e-05
    %v232 = vadd.f32 %v230, 1e-05
    %v233 = vrsqrt.pop %v231
    %v234 = vrsqrt.pop %v232
    %v235 = vmul.f32 %v214, %v233
    %v236 = vmul.f32 %v215, %v234
    %v237 = vlaneseq
    %v238 = vshrl.u32 %v237, 7
    %v239 = vsub.s32 0, %v238
    %v240 = vrot.slane %v107, %v239
    %v241 = vmul.f32 %v235, %v240
    %v242 = vmul.f32 %v236, %v240
    %v243 = vlaneseq
    %v244 = vshrl.u32 %v243, 7
    %v245 = vsub.s32 0, %v244
    %v246 = vrot.slane %v108, %v245
    %v247 = vadd.f32 %v241, %v246
    %v248 = vadd.f32 %v242, %v246
    %v249 = vmax.f32 %v247, 0.0
    %v250 = vmax.f32 %v248, 0.0
    %v251 = vpack.c.bf16 %v250, %v249
    %v252 = vld [vmem:[#allocation7] sm:$0xf]
    %v253 = vld [vmem:[#allocation7 + $0x4] sm:$0xf]
    %v254 = vld [vmem:[#allocation7 + $0x8] sm:$0xf]
    %v255 = vld [vmem:[#allocation7 + $0xc] sm:$0xf]
    %v256 = vld [vmem:[#allocation7 + $0x10] sm:$0xf]
    %v257 = vld [vmem:[#allocation7 + $0x14] sm:$0xf]
    %v258 = vld [vmem:[#allocation7 + $0x18] sm:$0xf]
    %v259 = vld [vmem:[#allocation7 + $0x1c] sm:$0xf]
    %v260 = vld [vmem:[#allocation7 + $0x20] sm:$0xf]
    %v261 = vld [vmem:[#allocation7 + $0x24] sm:$0xf]
    %v262 = vld [vmem:[#allocation7 + $0x28] sm:$0xf]
    %v263 = vld [vmem:[#allocation7 + $0x2c] sm:$0xf]
    %v264 = vld [vmem:[#allocation7 + $0x30] sm:$0xf]
    %v265 = vld [vmem:[#allocation7 + $0x34] sm:$0xf]
    %v266 = vld [vmem:[#allocation7 + $0x38] sm:$0xf]
    %v267 = vld [vmem:[#allocation7 + $0x3c] sm:$0xf]
    %v268 = vld [vmem:[#allocation10 + $0x3] sm:$0x1]
    %v269 = vld [vmem:[#allocation10 + $0x4] sm:$0x1]
    %v270 = vld [vmem:[#allocation10 + $0x5] sm:$0x1]
    %v271 = vlaneseq
    %v272 = vshrl.u32 %v271, 7
    %v273 = vsub.s32 0, %v272
    %v274 = vrot.slane %v268, %v273
    %v291 = vunpack.c.l.b16 %v252
    %v292 = vunpack.c.l.b16 %v253
    %v293 = vunpack.c.l.b16 %v254
    %v294 = vunpack.c.l.b16 %v255
    %v295 = vunpack.c.l.b16 %v256
    %v296 = vunpack.c.l.b16 %v257
    %v297 = vunpack.c.l.b16 %v258
    %v298 = vunpack.c.l.b16 %v259
    %v299 = vunpack.c.l.b16 %v260
    %v300 = vunpack.c.l.b16 %v261
    %v301 = vunpack.c.l.b16 %v262
    %v302 = vunpack.c.l.b16 %v263
    %v303 = vunpack.c.l.b16 %v264
    %v304 = vunpack.c.l.b16 %v265
    %v305 = vunpack.c.l.b16 %v266
    %v306 = vunpack.c.l.b16 %v267
    %v307 = vpack.c.b16 %v292, %v291
    %v308 = vpack.c.b16 %v294, %v293
    %v309 = vpack.c.b16 %v296, %v295
    %v310 = vpack.c.b16 %v298, %v297
    %v311 = vpack.c.b16 %v300, %v299
    %v312 = vpack.c.b16 %v302, %v301
    %v313 = vpack.c.b16 %v304, %v303
    %v314 = vpack.c.b16 %v306, %v305
    %323 = vmatprep.subr.bf16.mxu0 0
    %324 = vmatpush1.bf16.msra.mxu0 %v314
    %325 = vmatprep.subr.bf16.mxu0 0
    %326 = vmatpush1.bf16.msra.mxu0 %v313
    %327 = vmatprep.subr.bf16.mxu0 0
    %328 = vmatpush1.bf16.msra.mxu0 %v312
    %329 = vmatprep.subr.bf16.mxu0 0
    %330 = vmatpush1.bf16.msra.mxu0 %v311
    %331 = vmatprep.subr.bf16.mxu0 0
    %332 = vmatpush1.bf16.msra.mxu0 %v310
    %333 = vmatprep.subr.bf16.mxu0 0
    %334 = vmatpush1.bf16.msra.mxu0 %v309
    %335 = vmatprep.subr.bf16.mxu0 0
    %336 = vmatpush1.bf16.msra.mxu0 %v308
    %337 = vmatprep.subr.bf16.mxu0 0
    %338 = vmatpush1.bf16.msra.mxu0 %v307
    %339 = vmatprep.subr.bf16.mxu0 0
    %340 = vmatpush2.bf16.msra.mxu0 0
    %341 = vmatprep.subr.bf16.mxu0 0
    %342 = vmatpush2.bf16.msra.mxu0 0
    %343 = vmatprep.subr.bf16.mxu0 0
    %344 = vmatpush2.bf16.msra.mxu0 0
    %345 = vmatprep.subr.bf16.mxu0 0
    %346 = vmatpush2.bf16.msra.mxu0 0
    %347 = vmatprep.subr.bf16.mxu0 0
    %348 = vmatpush2.bf16.msra.mxu0 0
    %349 = vmatprep.subr.bf16.mxu0 0
    %350 = vmatpush2.bf16.msra.mxu0 0
    %351 = vmatprep.subr.bf16.mxu0 0
    %352 = vmatpush2.bf16.msra.mxu0 0
    %353 = vmatprep.subr.bf16.mxu0 0
    %354 = vmatpush2.bf16.msra.mxu0 0
    %355 = vmatprep.mubr.bf16.mxu0 0
    %356 = vmatmul.mubr.bf16.gmra.mxu0 %v251
    %v357 = vpop.f32.mrf.mxu0
    %v358 = vadd.f32 %v274, %v357
    %v359 = vpop.f32.mrf.mxu0
    %v360 = vpop.f32.mrf.mxu0
    %v361 = vadd.f32 %v274, %v360
    %v362 = vpop.f32.mrf.mxu0
    %363 = vdwg.mxu0
    %364 = vadd.xlane.f32.xlu0 %v358
    %v365 = vpop.xlane.xlu0 %364
    %366 = vadd.xlane.f32.xlu0 %v361
    %v367 = vpop.xlane.xlu0 %366
    %v368 = vmul.f32 %v365, 0.03125
    %v369 = vmul.f32 %v367, 0.03125
    %v370 = vsub.f32 %v358, %v368
    %v371 = vsub.f32 %v361, %v369
    %v372 = vsel %vm220, %v370, 0.0
    %v373 = vsel %vm220, %v371, 0.0
    %v374 = vmul.f32 %v372, %v372
    %v375 = vmul.f32 %v373, %v373
    %376 = vadd.xlane.f32.xlu0 %v374
    %v377 = vpop.xlane.xlu0 %376
    %378 = vadd.xlane.f32.xlu0 %v375
    %v379 = vpop.xlane.xlu0 %378
    %v380 = vmul.f32 %v377, 0.03125
    %v381 = vmul.f32 %v379, 0.03125
    %v382 = vadd.f32 %v380, 1e-05
    %v383 = vadd.f32 %v381, 1e-05
    %v384 = vrsqrt.pop %v382
    %v385 = vrsqrt.pop %v383
    %v386 = vmul.f32 %v370, %v384
    %v387 = vmul.f32 %v371, %v385
    %v388 = vlaneseq
    %v389 = vshrl.u32 %v388, 7
    %v390 = vsub.s32 0, %v389
    %v391 = vrot.slane %v269, %v390
    %v392 = vmul.f32 %v386, %v391
    %v393 = vmul.f32 %v387, %v391
    %v394 = vlaneseq
    %v395 = vshrl.u32 %v394, 7
    %v396 = vsub.s32 0, %v395
    %v397 = vrot.slane %v270, %v396
    %v398 = vadd.f32 %v392, %v397
    %v399 = vadd.f32 %v393, %v397
    %v400 = vmax.f32 %v398, 0.0
    %v401 = vmax.f32 %v399, 0.0
    %v402 = vpack.c.bf16 %v401, %v400
    %v403 = vld [vmem:[#allocation8] sm:$0xf]
    %v404 = vld [vmem:[#allocation8 + $0x4] sm:$0xf]
    %v405 = vld [vmem:[#allocation8 + $0x8] sm:$0xf]
    %v406 = vld [vmem:[#allocation8 + $0xc] sm:$0xf]
    %v407 = vld [vmem:[#allocation8 + $0x10] sm:$0xf]
    %v408 = vld [vmem:[#allocation8 + $0x14] sm:$0xf]
    %v409 = vld [vmem:[#allocation8 + $0x18] sm:$0xf]
    %v410 = vld [vmem:[#allocation8 + $0x1c] sm:$0xf]
    %v411 = vld [vmem:[#allocation8 + $0x20] sm:$0xf]
    %v412 = vld [vmem:[#allocation8 + $0x24] sm:$0xf]
    %v413 = vld [vmem:[#allocation8 + $0x28] sm:$0xf]
    %v414 = vld [vmem:[#allocation8 + $0x2c] sm:$0xf]
    %v415 = vld [vmem:[#allocation8 + $0x30] sm:$0xf]
    %v416 = vld [vmem:[#allocation8 + $0x34] sm:$0xf]
    %v417 = vld [vmem:[#allocation8 + $0x38] sm:$0xf]
    %v418 = vld [vmem:[#allocation8 + $0x3c] sm:$0xf]
    %v419 = vld [vmem:[#allocation10 + $0x6] sm:$0x1]
    %v420 = vlaneseq
    %v421 = vshrl.u32 %v420, 7
    %v422 = vsub.s32 0, %v421
    %v423 = vrot.slane %v419, %v422
    %v440 = vunpack.c.l.b16 %v403
    %v441 = vunpack.c.l.b16 %v404
    %v442 = vunpack.c.l.b16 %v405
    %v443 = vunpack.c.l.b16 %v406
    %v444 = vunpack.c.l.b16 %v407
    %v445 = vunpack.c.l.b16 %v408
    %v446 = vunpack.c.l.b16 %v409
    %v447 = vunpack.c.l.b16 %v410
    %v448 = vunpack.c.l.b16 %v411
    %v449 = vunpack.c.l.b16 %v412
    %v450 = vunpack.c.l.b16 %v413
    %v451 = vunpack.c.l.b16 %v414
    %v452 = vunpack.c.l.b16 %v415
    %v453 = vunpack.c.l.b16 %v416
    %v454 = vunpack.c.l.b16 %v417
    %v455 = vunpack.c.l.b16 %v418
    %v456 = vpack.c.b16 %v441, %v440
    %v457 = vpack.c.b16 %v443, %v442
    %v458 = vpack.c.b16 %v445, %v444
    %v459 = vpack.c.b16 %v447, %v446
    %v460 = vpack.c.b16 %v449, %v448
    %v461 = vpack.c.b16 %v451, %v450
    %v462 = vpack.c.b16 %v453, %v452
    %v463 = vpack.c.b16 %v455, %v454
    %472 = vmatprep.subr.bf16.mxu0 0
    %473 = vmatpush1.bf16.msra.mxu0 %v463
    %474 = vmatprep.subr.bf16.mxu0 0
    %475 = vmatpush1.bf16.msra.mxu0 %v462
    %476 = vmatprep.subr.bf16.mxu0 0
    %477 = vmatpush1.bf16.msra.mxu0 %v461
    %478 = vmatprep.subr.bf16.mxu0 0
    %479 = vmatpush1.bf16.msra.mxu0 %v460
    %480 = vmatprep.subr.bf16.mxu0 0
    %481 = vmatpush1.bf16.msra.mxu0 %v459
    %482 = vmatprep.subr.bf16.mxu0 0
    %483 = vmatpush1.bf16.msra.mxu0 %v458
    %484 = vmatprep.subr.bf16.mxu0 0
    %485 = vmatpush1.bf16.msra.mxu0 %v457
    %486 = vmatprep.subr.bf16.mxu0 0
    %487 = vmatpush1.bf16.msra.mxu0 %v456
    %488 = vmatprep.subr.bf16.mxu0 0
    %489 = vmatpush2.bf16.msra.mxu0 0
    %490 = vmatprep.subr.bf16.mxu0 0
    %491 = vmatpush2.bf16.msra.mxu0 0
    %492 = vmatprep.subr.bf16.mxu0 0
    %493 = vmatpush2.bf16.msra.mxu0 0
    %494 = vmatprep.subr.bf16.mxu0 0
    %495 = vmatpush2.bf16.msra.mxu0 0
    %496 = vmatprep.subr.bf16.mxu0 0
    %497 = vmatpush2.bf16.msra.mxu0 0
    %498 = vmatprep.subr.bf16.mxu0 0
    %499 = vmatpush2.bf16.msra.mxu0 0
    %500 = vmatprep.subr.bf16.mxu0 0
    %501 = vmatpush2.bf16.msra.mxu0 0
    %502 = vmatprep.subr.bf16.mxu0 0
    %503 = vmatpush2.bf16.msra.mxu0 0
    %504 = vmatprep.mubr.bf16.mxu0 0
    %505 = vmatmul.mubr.bf16.gmra.mxu0 %v402
    %v506 = vpop.f32.mrf.mxu0
    %v507 = vadd.f32 %v423, %v506
    %v508 = vpop.f32.mrf.mxu0
    %v509 = vpop.f32.mrf.mxu0
    %v510 = vadd.f32 %v423, %v509
    %v511 = vpop.f32.mrf.mxu0
    %512 = vdwg.mxu0
    %513 = vst [vmem:[#allocation11] sm:$0xff] %v507
    %514 = vst [vmem:[#allocation11 + $0x8] sm:$0xff] %v510
    // Predicated region
    $region42: #{tpu_custom_call.1} parent=1 // pred_check
      _
    $region43: #{tpu_custom_call.1} parent=1 // pred_check_branch
      %516 = sbr.rel (0) target = $region45
    $region44: #{tpu_custom_call.1} parent=1 // pred_region
      %s518 = ssub.s32 256, 256
      %519 = vsyncadd [#allocation4], %s518
      %s520 = sshll.u32 [#allocation11], 4
      %s521 = int_to_ptr.vmem [resolvable:$true] %s520
      %526 = dma.vmem_to_hbm [thread:$0]  %s521, 256, %s5, [#allocation4], 128, 128, 8
    $region45: #{tpu_custom_call.1} parent=1 // pred_fallthru
      _
    // Predicated region
    $region46: #{tpu_custom_call.1} parent=1 // pred_check
      _
    $region47: #{tpu_custom_call.1} parent=1 // pred_check_branch
      %528 = sbr.rel (0) target = $region49
    $region48: #{tpu_custom_call.1} parent=1 // pred_region
      %529 = dma.done [#allocation4], 256
    $region49: #{tpu_custom_call.1} parent=1 // pred_fallthru
      _
    %530 = vsyncpa [#allocation3], 1
    %531 = vsyncpa [#allocation6], 1
    %532 = vsyncpa [#allocation9], 1
    %533 = vsyncpa [#allocation4], 1

// kernel: tpu_custom_call.1
$region0: #{tpu_custom_call.1}
  #allocation0 [shape = 'u32[]', space=smem, size = 0x4, offset = 0x4, fixed_abs, tag = 'smem constant byte address 0x4 - core index']
  #allocation1 [shape = 'u32[144,128]{1,0:T(1,128)}', space=vmem, size = 0x12000, scoped, tag = 'internal scratch']
  %s0 = inlined_call_operand.hbm [shape: bf16[16,128], index: 0, kind: input, shape index: {}]
  %s1 = inlined_call_operand.hbm [shape: bf16[128,128], index: 1, kind: input, shape index: {}]
  %s2 = inlined_call_operand.hbm [shape: bf16[128,128], index: 2, kind: input, shape index: {}]
  %s3 = inlined_call_operand.hbm [shape: bf16[128,128], index: 3, kind: input, shape index: {}]
  %s4 = inlined_call_operand.hbm [shape: f32[7,128], index: 4, kind: input, shape index: {}]
  %s5 = inlined_call_operand.hbm [shape: f32[16,128], index: 5, kind: output, shape index: {}]
  %s6 = sld [smem:[#allocation0]]
  $region50: #{tpu_custom_call.1} parent=0
    _
  %s8 = ssub.s32 1, %s6
  %s9 = scalar_select 0, %s8, %s6
  $region1: #{tpu_custom_call.1} parent=0
    #allocation2 [shape = 'u8[4096]{0}', space=vmem, size = 0x1000, scoped, tag = 'input window, operand 0, single buffered']
    #allocation3 [shape = 's32[1]{0}', space=sflag, size = 0x4, scoped, tag = 'scoped memory for tpu_custom_call.1']
    #allocation4 [shape = 's32[1]{0}', space=sflag, size = 0x4, scoped, tag = 'scoped memory for tpu_custom_call.1']
    #allocation5 [shape = 'u8[32768]{0}', space=vmem, size = 0x8000, scoped, tag = 'input window, operand 1, single buffered']
    #allocation6 [shape = 's32[1]{0}', space=sflag, size = 0x4, scoped, tag = 'scoped memory for tpu_custom_call.1']
    #allocation7 [shape = 'u8[32768]{0}', space=vmem, size = 0x8000, scoped, tag = 'input window, operand 2, single buffered']
    #allocation8 [shape = 'u8[32768]{0}', space=vmem, size = 0x8000, scoped, tag = 'input window, operand 3, single buffered']
    #allocation9 [shape = 's32[1]{0}', space=sflag, size = 0x4, scoped, tag = 'scoped memory for tpu_custom_call.1']
    #allocation10 [shape = 'u8[4096]{0}', space=vmem, size = 0x1000, scoped, tag = 'input window, operand 4, single buffered']
    #allocation11 [shape = 'u8[8192]{0}', space=vmem, size = 0x2000, scoped, tag = 'output window, operand 0, single buffered']
    %10 = vsyncpa [#allocation3], 0
    %11 = vsyncpa [#allocation6], 0
    %12 = vsyncpa [#allocation9], 0
    %13 = vsyncpa [#allocation4], 0
    // Predicated region
    $region2: #{tpu_custom_call.1} parent=1 // pred_check
      _
    $region3: #{tpu_custom_call.1} parent=1 // pred_check_branch
      %15 = sbr.rel (0) target = $region5
    $region4: #{tpu_custom_call.1} parent=1 // pred_region
      %s17 = ssub.s32 128, 128
      %18 = vsyncadd [#allocation3], %s17
      %s19 = sshll.u32 [#allocation2], 4
      %s20 = int_to_ptr.vmem [resolvable:$true] %s19
      %25 = dma.hbm_to_vmem [thread:$0]  %s0, 128, %s20, [#allocation3], 64, 64, 4
    $region5: #{tpu_custom_call.1} parent=1 // pred_fallthru
      _
    // Predicated region
    $region6: #{tpu_custom_call.1} parent=1 // pred_check
      _
    $region7: #{tpu_custom_call.1} parent=1 // pred_check_branch
      %27 = sbr.rel (0) target = $region9
    $region8: #{tpu_custom_call.1} parent=1 // pred_region
      %s29 = ssub.s32 1024, 1024
      %30 = vsyncadd [#allocation6], %s29
      %s31 = sshll.u32 [#allocation5], 4
      %s32 = int_to_ptr.vmem [resolvable:$true] %s31
      %37 = dma.hbm_to_vmem [thread:$0]  %s1, 1024, %s32, [#allocation6], 64, 64, 4
    $region9: #{tpu_custom_call.1} parent=1 // pred_fallthru
      _
    // Predicated region
    $region10: #{tpu_custom_call.1} parent=1 // pred_check
      _
    $region11: #{tpu_custom_call.1} parent=1 // pred_check_branch
      %39 = sbr.rel (0) target = $region13
    $region12: #{tpu_custom_call.1} parent=1 // pred_region
      %s41 = ssub.s32 1024, 1024
      %42 = vsyncadd [#allocation6], %s41
      %s43 = sshll.u32 [#allocation7], 4
      %s44 = int_to_ptr.vmem [resolvable:$true] %s43
      %49 = dma.hbm_to_vmem [thread:$0]  %s2, 1024, %s44, [#allocation6], 64, 64, 4
    $region13: #{tpu_custom_call.1} parent=1 // pred_fallthru
      _
    // Predicated region
    $region14: #{tpu_custom_call.1} parent=1 // pred_check
      _
    $region15: #{tpu_custom_call.1} parent=1 // pred_check_branch
      %51 = sbr.rel (0) target = $region17
    $region16: #{tpu_custom_call.1} parent=1 // pred_region
      %s53 = ssub.s32 1024, 1024
      %54 = vsyncadd [#allocation9], %s53
      %s55 = sshll.u32 [#allocation8], 4
      %s56 = int_to_ptr.vmem [resolvable:$true] %s55
      %61 = dma.hbm_to_vmem [thread:$0]  %s3, 1024, %s56, [#allocation9], 64, 64, 4
    $region17: #{tpu_custom_call.1} parent=1 // pred_fallthru
      _
    // Predicated region
    $region18: #{tpu_custom_call.1} parent=1 // pred_check
      _
    $region19: #{tpu_custom_call.1} parent=1 // pred_check_branch
      %63 = sbr.rel (0) target = $region21
    $region20: #{tpu_custom_call.1} parent=1 // pred_region
      %s65 = ssub.s32 128, 128
      %66 = vsyncadd [#allocation9], %s65
      %s68 = sshll.u32 [#allocation10], 4
      %s69 = int_to_ptr.vmem [resolvable:$true] %s68
      %71 = dma.hbm_to_vmem [thread:$0]  %s4, 128, %s69, [#allocation9]
    $region21: #{tpu_custom_call.1} parent=1 // pred_fallthru
      _
    // Predicated region
    $region22: #{tpu_custom_call.1} parent=1 // pred_check
      _
    $region23: #{tpu_custom_call.1} parent=1 // pred_check_branch
      %73 = sbr.rel (0) target = $region25
    $region24: #{tpu_custom_call.1} parent=1 // pred_region
      %74 = dma.done [#allocation3], 128
    $region25: #{tpu_custom_call.1} parent=1 // pred_fallthru
      _
    // Predicated region
    $region26: #{tpu_custom_call.1} parent=1 // pred_check
      _
    $region27: #{tpu_custom_call.1} parent=1 // pred_check_branch
      %76 = sbr.rel (0) target = $region29
    $region28: #{tpu_custom_call.1} parent=1 // pred_region
      %77 = dma.done [#allocation6], 1024
    $region29: #{tpu_custom_call.1} parent=1 // pred_fallthru
      _
    // Predicated region
    $region30: #{tpu_custom_call.1} parent=1 // pred_check
      _
    $region31: #{tpu_custom_call.1} parent=1 // pred_check_branch
      %79 = sbr.rel (0) target = $region33
    $region32: #{tpu_custom_call.1} parent=1 // pred_region
      %80 = dma.done [#allocation6], 1024
    $region33: #{tpu_custom_call.1} parent=1 // pred_fallthru
      _
    // Predicated region
    $region34: #{tpu_custom_call.1} parent=1 // pred_check
      _
    $region35: #{tpu_custom_call.1} parent=1 // pred_check_branch
      %82 = sbr.rel (0) target = $region37
    $region36: #{tpu_custom_call.1} parent=1 // pred_region
      %83 = dma.done [#allocation9], 1024
    $region37: #{tpu_custom_call.1} parent=1 // pred_fallthru
      _
    // Predicated region
    $region38: #{tpu_custom_call.1} parent=1 // pred_check
      _
    $region39: #{tpu_custom_call.1} parent=1 // pred_check_branch
      %85 = sbr.rel (0) target = $region41
    $region40: #{tpu_custom_call.1} parent=1 // pred_region
      %86 = dma.done [#allocation9], 128
    $region41: #{tpu_custom_call.1} parent=1 // pred_fallthru
      _
    %v88 = vld [vmem:[#allocation2] sm:$0xf]
    %v89 = vld [vmem:[#allocation2 + $0x4] sm:$0xf]
    %v90 = vld [vmem:[#allocation5] sm:$0xf]
    %v91 = vld [vmem:[#allocation5 + $0x4] sm:$0xf]
    %v92 = vld [vmem:[#allocation5 + $0x8] sm:$0xf]
    %v93 = vld [vmem:[#allocation5 + $0xc] sm:$0xf]
    %v94 = vld [vmem:[#allocation5 + $0x10] sm:$0xf]
    %v95 = vld [vmem:[#allocation5 + $0x14] sm:$0xf]
    %v96 = vld [vmem:[#allocation5 + $0x18] sm:$0xf]
    %v97 = vld [vmem:[#allocation5 + $0x1c] sm:$0xf]
    %v98 = vld [vmem:[#allocation5 + $0x20] sm:$0xf]
    %v99 = vld [vmem:[#allocation5 + $0x24] sm:$0xf]
    %v100 = vld [vmem:[#allocation5 + $0x28] sm:$0xf]
    %v101 = vld [vmem:[#allocation5 + $0x2c] sm:$0xf]
    %v102 = vld [vmem:[#allocation5 + $0x30] sm:$0xf]
    %v103 = vld [vmem:[#allocation5 + $0x34] sm:$0xf]
    %v104 = vld [vmem:[#allocation5 + $0x38] sm:$0xf]
    %v105 = vld [vmem:[#allocation5 + $0x3c] sm:$0xf]
    %v106 = vld [vmem:[#allocation10] sm:$0x1]
    %v107 = vld [vmem:[#allocation10 + $0x1] sm:$0x1]
    %v108 = vld [vmem:[#allocation10 + $0x2] sm:$0x1]
    %v109 = vlaneseq
    %v110 = vshrl.u32 %v109, 7
    %v111 = vsub.s32 0, %v110
    %v112 = vrot.slane %v106, %v111
    %v115 = vunpack.c.l.b16 %v88
    %v116 = vunpack.c.l.b16 %v89
    %v117 = vpack.c.b16 %v116, %v115
    %v135 = vunpack.c.l.b16 %v90
    %v136 = vunpack.c.l.b16 %v91
    %v137 = vunpack.c.l.b16 %v92
    %v138 = vunpack.c.l.b16 %v93
    %v139 = vunpack.c.l.b16 %v94
    %v140 = vunpack.c.l.b16 %v95
    %v141 = vunpack.c.l.b16 %v96
    %v142 = vunpack.c.l.b16 %v97
    %v143 = vunpack.c.l.b16 %v98
    %v144 = vunpack.c.l.b16 %v99
    %v145 = vunpack.c.l.b16 %v100
    %v146 = vunpack.c.l.b16 %v101
    %v147 = vunpack.c.l.b16 %v102
    %v148 = vunpack.c.l.b16 %v103
    %v149 = vunpack.c.l.b16 %v104
    %v150 = vunpack.c.l.b16 %v105
    %v151 = vpack.c.b16 %v136, %v135
    %v152 = vpack.c.b16 %v138, %v137
    %v153 = vpack.c.b16 %v140, %v139
    %v154 = vpack.c.b16 %v142, %v141
    %v155 = vpack.c.b16 %v144, %v143
    %v156 = vpack.c.b16 %v146, %v145
    %v157 = vpack.c.b16 %v148, %v147
    %v158 = vpack.c.b16 %v150, %v149
    %167 = vmatprep.subr.bf16.mxu0 0
    %168 = vmatpush1.bf16.msra.mxu0 %v158
    %169 = vmatprep.subr.bf16.mxu0 0
    %170 = vmatpush1.bf16.msra.mxu0 %v157
    %171 = vmatprep.subr.bf16.mxu0 0
    %172 = vmatpush1.bf16.msra.mxu0 %v156
    %173 = vmatprep.subr.bf16.mxu0 0
    %174 = vmatpush1.bf16.msra.mxu0 %v155
    %175 = vmatprep.subr.bf16.mxu0 0
    %176 = vmatpush1.bf16.msra.mxu0 %v154
    %177 = vmatprep.subr.bf16.mxu0 0
    %178 = vmatpush1.bf16.msra.mxu0 %v153
    %179 = vmatprep.subr.bf16.mxu0 0
    %180 = vmatpush1.bf16.msra.mxu0 %v152
    %181 = vmatprep.subr.bf16.mxu0 0
    %182 = vmatpush1.bf16.msra.mxu0 %v151
    %183 = vmatprep.subr.bf16.mxu0 0
    %184 = vmatpush2.bf16.msra.mxu0 0
    %185 = vmatprep.subr.bf16.mxu0 0
    %186 = vmatpush2.bf16.msra.mxu0 0
    %187 = vmatprep.subr.bf16.mxu0 0
    %188 = vmatpush2.bf16.msra.mxu0 0
    %189 = vmatprep.subr.bf16.mxu0 0
    %190 = vmatpush2.bf16.msra.mxu0 0
    %191 = vmatprep.subr.bf16.mxu0 0
    %192 = vmatpush2.bf16.msra.mxu0 0
    %193 = vmatprep.subr.bf16.mxu0 0
    %194 = vmatpush2.bf16.msra.mxu0 0
    %195 = vmatprep.subr.bf16.mxu0 0
    %196 = vmatpush2.bf16.msra.mxu0 0
    %197 = vmatprep.subr.bf16.mxu0 0
    %198 = vmatpush2.bf16.msra.mxu0 0
    %199 = vmatprep.mubr.bf16.mxu0 0
    %200 = vmatmul.mubr.bf16.gmra.mxu0 %v117
    %v201 = vpop.f32.mrf.mxu0
    %v202 = vadd.f32 %v112, %v201
    %v203 = vpop.f32.mrf.mxu0
    %v204 = vpop.f32.mrf.mxu0
    %v205 = vadd.f32 %v112, %v204
    %v206 = vpop.f32.mrf.mxu0
    %207 = vdwg.mxu0
    %208 = vadd.xlane.f32.xlu0 %v202
    %v209 = vpop.xlane.xlu0 %208
    %210 = vadd.xlane.f32.xlu0 %v205
    %v211 = vpop.xlane.xlu0 %210
    %v212 = vmul.f32 %v209, 0.03125
    %v213 = vmul.f32 %v211, 0.03125
    %v214 = vsub.f32 %v202, %v212
    %v215 = vsub.f32 %v205, %v213
    %v216 = vlaneseq
    %v217 = vand.u32 %v216, 127
    %vm218 = vcmp.lt.s32.totalorder %v217, 32
    %v219 = vsel %vm218, 1, 0
    %vm220 = vcmp.eq.s32.totalorder %v219, 1
    %v221 = vsel %vm220, %v214, 0.0
    %v222 = vsel %vm220, %v215, 0.0
    %v223 = vmul.f32 %v221, %v221
    %v224 = vmul.f32 %v222, %v222
    %225 = vadd.xlane.f32.xlu0 %v223
    %v226 = vpop.xlane.xlu0 %225
    %227 = vadd.xlane.f32.xlu0 %v224
    %v228 = vpop.xlane.xlu0 %227
    %v229 = vmul.f32 %v226, 0.03125
    %v230 = vmul.f32 %v228, 0.03125
    %v231 = vadd.f32 %v229, 1e-05
    %v232 = vadd.f32 %v230, 1e-05
    %v233 = vrsqrt.pop %v231
    %v234 = vrsqrt.pop %v232
    %v235 = vmul.f32 %v214, %v233
    %v236 = vmul.f32 %v215, %v234
    %v237 = vlaneseq
    %v238 = vshrl.u32 %v237, 7
    %v239 = vsub.s32 0, %v238
    %v240 = vrot.slane %v107, %v239
    %v241 = vmul.f32 %v235, %v240
    %v242 = vmul.f32 %v236, %v240
    %v243 = vlaneseq
    %v244 = vshrl.u32 %v243, 7
    %v245 = vsub.s32 0, %v244
    %v246 = vrot.slane %v108, %v245
    %v247 = vadd.f32 %v241, %v246
    %v248 = vadd.f32 %v242, %v246
    %v249 = vmax.f32 %v247, 0.0
    %v250 = vmax.f32 %v248, 0.0
    %v251 = vpack.c.bf16 %v250, %v249
    %v252 = vld [vmem:[#allocation7] sm:$0xf]
    %v253 = vld [vmem:[#allocation7 + $0x4] sm:$0xf]
    %v254 = vld [vmem:[#allocation7 + $0x8] sm:$0xf]
    %v255 = vld [vmem:[#allocation7 + $0xc] sm:$0xf]
    %v256 = vld [vmem:[#allocation7 + $0x10] sm:$0xf]
    %v257 = vld [vmem:[#allocation7 + $0x14] sm:$0xf]
    %v258 = vld [vmem:[#allocation7 + $0x18] sm:$0xf]
    %v259 = vld [vmem:[#allocation7 + $0x1c] sm:$0xf]
    %v260 = vld [vmem:[#allocation7 + $0x20] sm:$0xf]
    %v261 = vld [vmem:[#allocation7 + $0x24] sm:$0xf]
    %v262 = vld [vmem:[#allocation7 + $0x28] sm:$0xf]
    %v263 = vld [vmem:[#allocation7 + $0x2c] sm:$0xf]
    %v264 = vld [vmem:[#allocation7 + $0x30] sm:$0xf]
    %v265 = vld [vmem:[#allocation7 + $0x34] sm:$0xf]
    %v266 = vld [vmem:[#allocation7 + $0x38] sm:$0xf]
    %v267 = vld [vmem:[#allocation7 + $0x3c] sm:$0xf]
    %v268 = vld [vmem:[#allocation10 + $0x3] sm:$0x1]
    %v269 = vld [vmem:[#allocation10 + $0x4] sm:$0x1]
    %v270 = vld [vmem:[#allocation10 + $0x5] sm:$0x1]
    %v271 = vlaneseq
    %v272 = vshrl.u32 %v271, 7
    %v273 = vsub.s32 0, %v272
    %v274 = vrot.slane %v268, %v273
    %v291 = vunpack.c.l.b16 %v252
    %v292 = vunpack.c.l.b16 %v253
    %v293 = vunpack.c.l.b16 %v254
    %v294 = vunpack.c.l.b16 %v255
    %v295 = vunpack.c.l.b16 %v256
    %v296 = vunpack.c.l.b16 %v257
    %v297 = vunpack.c.l.b16 %v258
    %v298 = vunpack.c.l.b16 %v259
    %v299 = vunpack.c.l.b16 %v260
    %v300 = vunpack.c.l.b16 %v261
    %v301 = vunpack.c.l.b16 %v262
    %v302 = vunpack.c.l.b16 %v263
    %v303 = vunpack.c.l.b16 %v264
    %v304 = vunpack.c.l.b16 %v265
    %v305 = vunpack.c.l.b16 %v266
    %v306 = vunpack.c.l.b16 %v267
    %v307 = vpack.c.b16 %v292, %v291
    %v308 = vpack.c.b16 %v294, %v293
    %v309 = vpack.c.b16 %v296, %v295
    %v310 = vpack.c.b16 %v298, %v297
    %v311 = vpack.c.b16 %v300, %v299
    %v312 = vpack.c.b16 %v302, %v301
    %v313 = vpack.c.b16 %v304, %v303
    %v314 = vpack.c.b16 %v306, %v305
    %323 = vmatprep.subr.bf16.mxu0 0
    %324 = vmatpush1.bf16.msra.mxu0 %v314
    %325 = vmatprep.subr.bf16.mxu0 0
    %326 = vmatpush1.bf16.msra.mxu0 %v313
    %327 = vmatprep.subr.bf16.mxu0 0
    %328 = vmatpush1.bf16.msra.mxu0 %v312
    %329 = vmatprep.subr.bf16.mxu0 0
    %330 = vmatpush1.bf16.msra.mxu0 %v311
    %331 = vmatprep.subr.bf16.mxu0 0
    %332 = vmatpush1.bf16.msra.mxu0 %v310
    %333 = vmatprep.subr.bf16.mxu0 0
    %334 = vmatpush1.bf16.msra.mxu0 %v309
    %335 = vmatprep.subr.bf16.mxu0 0
    %336 = vmatpush1.bf16.msra.mxu0 %v308
    %337 = vmatprep.subr.bf16.mxu0 0
    %338 = vmatpush1.bf16.msra.mxu0 %v307
    %339 = vmatprep.subr.bf16.mxu0 0
    %340 = vmatpush2.bf16.msra.mxu0 0
    %341 = vmatprep.subr.bf16.mxu0 0
    %342 = vmatpush2.bf16.msra.mxu0 0
    %343 = vmatprep.subr.bf16.mxu0 0
    %344 = vmatpush2.bf16.msra.mxu0 0
    %345 = vmatprep.subr.bf16.mxu0 0
    %346 = vmatpush2.bf16.msra.mxu0 0
    %347 = vmatprep.subr.bf16.mxu0 0
    %348 = vmatpush2.bf16.msra.mxu0 0
    %349 = vmatprep.subr.bf16.mxu0 0
    %350 = vmatpush2.bf16.msra.mxu0 0
    %351 = vmatprep.subr.bf16.mxu0 0
    %352 = vmatpush2.bf16.msra.mxu0 0
    %353 = vmatprep.subr.bf16.mxu0 0
    %354 = vmatpush2.bf16.msra.mxu0 0
    %355 = vmatprep.mubr.bf16.mxu0 0
    %356 = vmatmul.mubr.bf16.gmra.mxu0 %v251
    %v357 = vpop.f32.mrf.mxu0
    %v358 = vadd.f32 %v274, %v357
    %v359 = vpop.f32.mrf.mxu0
    %v360 = vpop.f32.mrf.mxu0
    %v361 = vadd.f32 %v274, %v360
    %v362 = vpop.f32.mrf.mxu0
    %363 = vdwg.mxu0
    %364 = vadd.xlane.f32.xlu0 %v358
    %v365 = vpop.xlane.xlu0 %364
    %366 = vadd.xlane.f32.xlu0 %v361
    %v367 = vpop.xlane.xlu0 %366
    %v368 = vmul.f32 %v365, 0.03125
    %v369 = vmul.f32 %v367, 0.03125
    %v370 = vsub.f32 %v358, %v368
    %v371 = vsub.f32 %v361, %v369
    %v372 = vsel %vm220, %v370, 0.0
    %v373 = vsel %vm220, %v371, 0.0
    %v374 = vmul.f32 %v372, %v372
    %v375 = vmul.f32 %v373, %v373
    %376 = vadd.xlane.f32.xlu0 %v374
    %v377 = vpop.xlane.xlu0 %376
    %378 = vadd.xlane.f32.xlu0 %v375
    %v379 = vpop.xlane.xlu0 %378
    %v380 = vmul.f32 %v377, 0.03125
    %v381 = vmul.f32 %v379, 0.03125
    %v382 = vadd.f32 %v380, 1e-05
    %v383 = vadd.f32 %v381, 1e-05
    %v384 = vrsqrt.pop %v382
    %v385 = vrsqrt.pop %v383
    %v386 = vmul.f32 %v370, %v384
    %v387 = vmul.f32 %v371, %v385
    %v388 = vlaneseq
    %v389 = vshrl.u32 %v388, 7
    %v390 = vsub.s32 0, %v389
    %v391 = vrot.slane %v269, %v390
    %v392 = vmul.f32 %v386, %v391
    %v393 = vmul.f32 %v387, %v391
    %v394 = vlaneseq
    %v395 = vshrl.u32 %v394, 7
    %v396 = vsub.s32 0, %v395
    %v397 = vrot.slane %v270, %v396
    %v398 = vadd.f32 %v392, %v397
    %v399 = vadd.f32 %v393, %v397
    %v400 = vmax.f32 %v398, 0.0
    %v401 = vmax.f32 %v399, 0.0
    %v402 = vpack.c.bf16 %v401, %v400
    %v403 = vld [vmem:[#allocation8] sm:$0xf]
    %v404 = vld [vmem:[#allocation8 + $0x4] sm:$0xf]
    %v405 = vld [vmem:[#allocation8 + $0x8] sm:$0xf]
    %v406 = vld [vmem:[#allocation8 + $0xc] sm:$0xf]
    %v407 = vld [vmem:[#allocation8 + $0x10] sm:$0xf]
    %v408 = vld [vmem:[#allocation8 + $0x14] sm:$0xf]
    %v409 = vld [vmem:[#allocation8 + $0x18] sm:$0xf]
    %v410 = vld [vmem:[#allocation8 + $0x1c] sm:$0xf]
    %v411 = vld [vmem:[#allocation8 + $0x20] sm:$0xf]
    %v412 = vld [vmem:[#allocation8 + $0x24] sm:$0xf]
    %v413 = vld [vmem:[#allocation8 + $0x28] sm:$0xf]
    %v414 = vld [vmem:[#allocation8 + $0x2c] sm:$0xf]
    %v415 = vld [vmem:[#allocation8 + $0x30] sm:$0xf]
    %v416 = vld [vmem:[#allocation8 + $0x34] sm:$0xf]
    %v417 = vld [vmem:[#allocation8 + $0x38] sm:$0xf]
    %v418 = vld [vmem:[#allocation8 + $0x3c] sm:$0xf]
    %v419 = vld [vmem:[#allocation10 + $0x6] sm:$0x1]
    %v420 = vlaneseq
    %v421 = vshrl.u32 %v420, 7
    %v422 = vsub.s32 0, %v421
    %v423 = vrot.slane %v419, %v422
    %v440 = vunpack.c.l.b16 %v403
    %v441 = vunpack.c.l.b16 %v404
    %v442 = vunpack.c.l.b16 %v405
    %v443 = vunpack.c.l.b16 %v406
    %v444 = vunpack.c.l.b16 %v407
    %v445 = vunpack.c.l.b16 %v408
    %v446 = vunpack.c.l.b16 %v409
    %v447 = vunpack.c.l.b16 %v410
    %v448 = vunpack.c.l.b16 %v411
    %v449 = vunpack.c.l.b16 %v412
    %v450 = vunpack.c.l.b16 %v413
    %v451 = vunpack.c.l.b16 %v414
    %v452 = vunpack.c.l.b16 %v415
    %v453 = vunpack.c.l.b16 %v416
    %v454 = vunpack.c.l.b16 %v417
    %v455 = vunpack.c.l.b16 %v418
    %v456 = vpack.c.b16 %v441, %v440
    %v457 = vpack.c.b16 %v443, %v442
    %v458 = vpack.c.b16 %v445, %v444
    %v459 = vpack.c.b16 %v447, %v446
    %v460 = vpack.c.b16 %v449, %v448
    %v461 = vpack.c.b16 %v451, %v450
    %v462 = vpack.c.b16 %v453, %v452
    %v463 = vpack.c.b16 %v455, %v454
    %472 = vmatprep.subr.bf16.mxu0 0
    %473 = vmatpush1.bf16.msra.mxu0 %v463
    %474 = vmatprep.subr.bf16.mxu0 0
    %475 = vmatpush1.bf16.msra.mxu0 %v462
    %476 = vmatprep.subr.bf16.mxu0 0
    %477 = vmatpush1.bf16.msra.mxu0 %v461
    %478 = vmatprep.subr.bf16.mxu0 0
    %479 = vmatpush1.bf16.msra.mxu0 %v460
    %480 = vmatprep.subr.bf16.mxu0 0
    %481 = vmatpush1.bf16.msra.mxu0 %v459
    %482 = vmatprep.subr.bf16.mxu0 0
    %483 = vmatpush1.bf16.msra.mxu0 %v458
    %484 = vmatprep.subr.bf16.mxu0 0
    %485 = vmatpush1.bf16.msra.mxu0 %v457
    %486 = vmatprep.subr.bf16.mxu0 0
    %487 = vmatpush1.bf16.msra.mxu0 %v456
    %488 = vmatprep.subr.bf16.mxu0 0
    %489 = vmatpush2.bf16.msra.mxu0 0
    %490 = vmatprep.subr.bf16.mxu0 0
    %491 = vmatpush2.bf16.msra.mxu0 0
    %492 = vmatprep.subr.bf16.mxu0 0
    %493 = vmatpush2.bf16.msra.mxu0 0
    %494 = vmatprep.subr.bf16.mxu0 0
    %495 = vmatpush2.bf16.msra.mxu0 0
    %496 = vmatprep.subr.bf16.mxu0 0
    %497 = vmatpush2.bf16.msra.mxu0 0
    %498 = vmatprep.subr.bf16.mxu0 0
    %499 = vmatpush2.bf16.msra.mxu0 0
    %500 = vmatprep.subr.bf16.mxu0 0
    %501 = vmatpush2.bf16.msra.mxu0 0
    %502 = vmatprep.subr.bf16.mxu0 0
    %503 = vmatpush2.bf16.msra.mxu0 0
    %504 = vmatprep.mubr.bf16.mxu0 0
    %505 = vmatmul.mubr.bf16.gmra.mxu0 %v402
    %v506 = vpop.f32.mrf.mxu0
    %v507 = vadd.f32 %v423, %v506
    %v508 = vpop.f32.mrf.mxu0
    %v509 = vpop.f32.mrf.mxu0
    %v510 = vadd.f32 %v423, %v509
    %v511 = vpop.f32.mrf.mxu0
    %512 = vdwg.mxu0
    %513 = vst [vmem:[#allocation11] sm:$0xff] %v507
    %514 = vst [vmem:[#allocation11 + $0x8] sm:$0xff] %v510
    // Predicated region
    $region42: #{tpu_custom_call.1} parent=1 // pred_check
      _
    $region43: #{tpu_custom_call.1} parent=1 // pred_check_branch
      %516 = sbr.rel (0) target = $region45
    $region44: #{tpu_custom_call.1} parent=1 // pred_region
      %s518 = ssub.s32 256, 256
      %519 = vsyncadd [#allocation4], %s518
      %s520 = sshll.u32 [#allocation11], 4
      %s521 = int_to_ptr.vmem [resolvable:$true] %s520
      %526 = dma.vmem_to_hbm [thread:$0]  %s521, 256, %s5, [#allocation4], 128, 128, 8
    $region45: #{tpu_custom_call.1} parent=1 // pred_fallthru
      _
    // Predicated region
    $region46: #{tpu_custom_call.1} parent=1 // pred_check
      _
    $region47: #{tpu_custom_call.1} parent=1 // pred_check_branch
      %528 = sbr.rel (0) target = $region49
    $region48: #{tpu_custom_call.1} parent=1 // pred_region
      %529 = dma.done [#allocation4], 256
    $region49: #{tpu_custom_call.1} parent=1 // pred_fallthru
      _
    %530 = vsyncpa [#allocation3], 1
    %531 = vsyncpa [#allocation6], 1
    %532 = vsyncpa [#allocation9], 1
    %533 = vsyncpa [#allocation4], 1

</llo_original>
